<compile_context>
chip_gen: v7x
topology: tpu7x:2x2x1
jax: 0.10.0
libtpu: 0.0.40
codegen_flags: <defaults>
</compile_context>

<pallas_src>
import functools

import numpy as np
import jax
import jax.numpy as jnp
from jax.experimental import pallas as pl
from jax.experimental.pallas import tpu as pltpu

EPS = 1e-5


def _sigmoid(z):
    # exp and the approximate reciprocal both issue on the (otherwise idle) EUP.
    return pl.reciprocal(1.0 + jnp.exp(-z), approx=True)


# ----------------------------------------------------------------------------
# Pallas kernel: one grid step processes `nb` images, HW on the lane axis.
# ----------------------------------------------------------------------------
def attention_gate_kernel(g_ref, x_ref, wg_ref, wx_ref, bw_ref, masks_ref,
                          scal_ref, out_ref, *, width, hw, nb):
    # g_ref : (nb, F_g, HW) bf16    x_ref : (nb, F_l, HW) f32
    # wg_ref: (F_int, F_g) bf16     wx_ref: (F_int, F_l) bf16
    # bw_ref: (F_int, 2) f32  [col 0: fused BN bias, col 1: folded psi weight]
    # masks_ref: (14, HW) f32 [rows 0..6: dh row-validity, rows 7..13: dw col-validity]
    # scal_ref : SMEM f32[100] [98 folded 7x7 taps, psi bias, spatial bias]
    x_f32 = x_ref[...]                                  # (nb, F_l, HW)

    # ---- spatial-attention branch (batched over nb along sublanes) ----------
    avg = jnp.mean(x_f32, axis=1)                       # (nb, HW)
    mx = jnp.max(x_f32, axis=1)                         # (nb, HW)

    # 7x7 conv with zero padding, no scratch / unaligned slices:
    #   R[c,dh]  = rowmask_dh * roll(row_c, -dh*W)          (vertical offsets)
    #   out      = sum_dw colmask_dw * roll(sum_{c,dh} w[c,dh,dw] * R[c,dh], -dw)
    # Wrapped lanes from the rolls are exactly the positions the masks zero out.
    rows = []
    for dh in range(-3, 4):
        if dh == 0:
            rows.append((avg, mx))
        else:
            shift = (-dh * width) % hw
            rm = masks_ref[dh + 3:dh + 4, :]            # (1, HW) row validity
            rows.append((rm * pltpu.roll(avg, shift, axis=1),
                         rm * pltpu.roll(mx, shift, axis=1)))

    sp_logit = jnp.zeros((nb, hw), jnp.float32)
    for dw in range(-3, 4):
        acc = jnp.zeros((nb, hw), jnp.float32)
        for dh in range(-3, 4):
            r_avg, r_mx = rows[dh + 3]
            w_avg = scal_ref[(dh + 3) * 7 + (dw + 3)]
            w_max = scal_ref[49 + (dh + 3) * 7 + (dw + 3)]
            acc = acc + w_avg * r_avg + w_max * r_mx
        if dw != 0:
            acc = pltpu.roll(acc, (-dw) % hw, axis=1)
        sp_logit = sp_logit + masks_ref[dw + 10:dw + 11, :] * acc
    sp = _sigmoid(sp_logit + scal_ref[99])              # (nb, HW)

    # ---- channel-attention branch + gating, per image (static unroll) -------
    bias_col = bw_ref[:, 0:1]                           # (F_int, 1) fused BN bias
    wpsi_col = bw_ref[:, 1:2]                           # (F_int, 1) folded psi weight
    wg = wg_ref[...]
    wx = wx_ref[...]
    for n in range(nb):
        # W_g / W_x 1x1 convs (+ folded BN) as two accumulated MXU passes.
        a = jnp.dot(wg, g_ref[n], preferred_element_type=jnp.float32)
        a = a + jnp.dot(wx, x_f32[n].astype(jnp.bfloat16),
                        preferred_element_type=jnp.float32)
        a = jnp.maximum(a + bias_col, 0.0)              # (F_int, HW)

        # psi: F_int->1 1x1 conv on the VPU (broadcast-mul) + sublane reduce.
        psi = _sigmoid(jnp.sum(a * wpsi_col, axis=0, keepdims=True)
                       + scal_ref[98])                  # (1, HW)

        out_ref[n] = (x_f32[n] * (psi * sp[n:n + 1, :])).astype(out_ref.dtype)


# ----------------------------------------------------------------------------
# Wrapper: free reshapes (no transposes) + pallas_call
# ----------------------------------------------------------------------------
def _images_per_step(n):
    """Largest divisor of n (<= 8) that keeps >= 2 grid steps (v7x dual-TC)."""
    best = 1
    for d in range(1, min(n // 2, 8) + 1):
        if n % d == 0:
            best = d
    return best


def attention_gate(g, x, kernel_params):
    N, F_g, H, W = g.shape
    F_l = x.shape[1]
    HW = H * W
    wg, wx, bw, masks, scal = kernel_params
    F_int = wg.shape[0]

    NB = _images_per_step(N)

    # g is only an MXU operand: DMA it as bf16 (halves its HBM->VMEM bytes).
    # x keeps its original dtype (mean/max + gating need it); its matmul copy
    # is cast to bf16 in-kernel, which is cheaper than a second DMA stream.
    g_flat = g.astype(jnp.bfloat16).reshape(N, F_g, HW)
    x_flat = x.reshape(N, F_l, HW)

    out_flat = pl.pallas_call(
        functools.partial(attention_gate_kernel, width=W, hw=HW, nb=NB),
        out_shape=jax.ShapeDtypeStruct((N, F_l, HW), x.dtype),
        grid_spec=pltpu.PrefetchScalarGridSpec(
            num_scalar_prefetch=0,
            grid=(N // NB,),
            in_specs=[
                pl.BlockSpec((NB, F_g, HW), lambda i: (i, 0, 0)),
                pl.BlockSpec((NB, F_l, HW), lambda i: (i, 0, 0)),
                pl.BlockSpec((F_int, F_g), lambda i: (0, 0)),
                pl.BlockSpec((F_int, F_l), lambda i: (0, 0)),
                pl.BlockSpec((F_int, 2), lambda i: (0, 0)),
                pl.BlockSpec((14, HW), lambda i: (0, 0)),
                pl.BlockSpec(memory_space=pltpu.MemorySpace.SMEM),
            ],
            out_specs=pl.BlockSpec((NB, F_l, HW), lambda i: (i, 0, 0)),
        ),
        compiler_params=pltpu.CompilerParams(dimension_semantics=("parallel",)),
    )(g_flat, x_flat, wg, wx, bw, masks, scal)

    return out_flat.reshape(N, F_l, H, W)


# ----------------------------------------------------------------------------
# Deterministic parameter init + BN folding + mask build (plain-JAX glue)
# ----------------------------------------------------------------------------
def make_params(key, F_g, F_l, F_int, H, W):
    keys = jax.random.split(key, 8)

    def bn_init(k, C):
        k1, k2, k3, k4 = jax.random.split(k, 4)
        gamma = jax.random.uniform(k1, (C,), jnp.float32, 0.7, 1.3)
        beta = jax.random.normal(k2, (C,), jnp.float32) * 0.1
        mean = jax.random.normal(k3, (C,), jnp.float32) * 0.1
        var = jax.random.uniform(k4, (C,), jnp.float32, 0.5, 1.5)
        return gamma, beta, mean, var

    w_g = jax.random.normal(keys[0], (F_int, F_g), jnp.float32) * 0.3
    w_x = jax.random.normal(keys[1], (F_int, F_l), jnp.float32) * 0.3
    w_psi = jax.random.normal(keys[2], (1, F_int), jnp.float32) * 0.3
    w_sp = jax.random.normal(keys[3], (1, 2, 7, 7), jnp.float32) * 0.2
    bn_g, bn_x = bn_init(keys[4], F_int), bn_init(keys[5], F_int)
    bn_p, bn_s = bn_init(keys[6], 1), bn_init(keys[7], 1)
    raw = ((w_g, bn_g), (w_x, bn_x), (w_psi, bn_p), (w_sp, bn_s))

    def fold(w, bn):  # (out, in) weight with BN scale folded; (out,) bias
        gamma, beta, mean, var = bn
        s = gamma / jnp.sqrt(var + EPS)
        return w * s[:, None], beta - mean * s

    wg_f, bg = fold(w_g, bn_g)
    wx_f, bx = fold(w_x, bn_x)
    wp_f, bp = fold(w_psi, bn_p)                        # (1, F_int), (1,)

    # (F_int, 2): col 0 = fused BN bias of (W_g g + W_x x), col 1 = psi weight.
    bw = jnp.stack([bg + bx, wp_f[0]], axis=1).astype(jnp.float32)

    gamma_s, beta_s, mean_s, var_s = bn_s
    ss = gamma_s / jnp.sqrt(var_s + EPS)
    w_sp_f = np.asarray(w_sp[0] * ss[0])                # (2, 7, 7) folded taps
    b_sp = float(beta_s[0] - mean_s[0] * ss[0])

    # SMEM scalars: 98 spatial taps + psi bias + spatial bias.
    scal = np.concatenate(
        [w_sp_f.reshape(-1).astype(np.float32),
         np.array([float(bp[0]), b_sp], np.float32)]).astype(np.float32)

    # Validity masks: rows 0..6 -> vertical (dh in [-3,3]); 7..13 -> horizontal (dw).
    HW = H * W
    rr = np.arange(HW) // W
    cc = np.arange(HW) % W
    rowmask = np.stack([((rr + dh >= 0) & (rr + dh < H)).astype(np.float32)
                        for dh in range(-3, 4)], axis=0)
    colmask = np.stack([((cc + dw >= 0) & (cc + dw < W)).astype(np.float32)
                        for dw in range(-3, 4)], axis=0)
    masks = np.concatenate([rowmask, colmask], axis=0)  # (14, HW)

    kernel_params = (wg_f.astype(jnp.bfloat16), wx_f.astype(jnp.bfloat16),
                     bw, jnp.asarray(masks), jnp.asarray(scal))
    return raw, kernel_params


# ----------------------------------------------------------------------------
# Pure-JAX reference (NCHW, f32 HIGHEST precision).
# ----------------------------------------------------------------------------
def reference(g, x, raw):
    (w_g, bn_g), (w_x, bn_x), (w_psi, bn_p), (w_sp, bn_s) = raw

    def bn_apply(y, bn):
        gamma, beta, mean, var = bn
        s = gamma / jnp.sqrt(var + EPS)
        return y * s[None, :, None, None] + (beta - mean * s)[None, :, None, None]

    hp = jax.lax.Precision.HIGHEST
    g1 = bn_apply(jnp.einsum('nchw,fc->nfhw', g, w_g, precision=hp), bn_g)
    x1 = bn_apply(jnp.einsum('nchw,fc->nfhw', x, w_x, precision=hp), bn_x)
    a = jnp.maximum(g1 + x1, 0.0)
    psi = jax.nn.sigmoid(bn_apply(jnp.einsum('nchw,fc->nfhw', a, w_psi, precision=hp), bn_p))
    avg = jnp.mean(x, axis=1, keepdims=True)
    mx = jnp.max(x, axis=1, keepdims=True)
    sp_in = jnp.concatenate([avg, mx], axis=1)
    sp = jax.lax.conv_general_dilated(sp_in, w_sp, (1, 1), ((3, 3), (3, 3)),
                                      dimension_numbers=('NCHW', 'OIHW', 'NCHW'),
                                      precision=hp)
    sp = jax.nn.sigmoid(bn_apply(sp, bn_s))
    return x * psi * sp


if __name__ == "__main__":
    key = jax.random.PRNGKey(0)
    N, H, W = 4, 16, 16          # N=4 exercises the images-per-step batching (NB=2)
    F_g, F_l, F_int = 8, 8, 16

    kg, kx, kp = jax.random.split(key, 3)
    g = jax.random.normal(kg, (N, F_g, H, W), jnp.float32)
    x = jax.random.normal(kx, (N, F_l, H, W), jnp.float32)

    raw, kernel_params = make_params(kp, F_g, F_l, F_int, H, W)

    out = attention_gate(g, x, kernel_params)
    out = jax.block_until_ready(out)

    ref = reference(g, x, raw)
    assert out.shape == x.shape
    # Kernel uses bf16 MXU operands and EUP approximate-reciprocal sigmoids;
    # reference is f32 HIGHEST, so tolerance covers bf16 input rounding.
    assert bool(jnp.allclose(out, ref, atol=3e-2, rtol=3e-2)), \
        float(jnp.max(jnp.abs(out - ref)))

    print("KERNEL_OK")
</pallas_src>

<mosaic_0001>
module attributes {stable_mosaic.version = 11 : i64} {
  func.func @attention_gate_kernel(%arg0: i32, %arg1: memref<2x8x256xbf16, #tpu.memory_space<vmem>>, %arg2: memref<2x8x256xf32, #tpu.memory_space<vmem>>, %arg3: memref<16x8xbf16, #tpu.memory_space<vmem>>, %arg4: memref<16x8xbf16, #tpu.memory_space<vmem>>, %arg5: memref<16x2xf32, #tpu.memory_space<vmem>>, %arg6: memref<14x256xf32, #tpu.memory_space<vmem>>, %arg7: memref<100xf32, #tpu.memory_space<smem>>, %arg8: memref<2x8x256xf32, #tpu.memory_space<vmem>>) attributes {dimension_semantics = [#tpu.dimension_semantics<parallel>], iteration_bounds = array<i64: 2>, scalar_prefetch = 0 : i64, scratch_operands = 0 : i64, tpu.core_type = #tpu.core_type<tc>, window_params = [{transform_indices = @transform_0, window_bounds = array<i64: 2, 8, 256>}, {transform_indices = @transform_1, window_bounds = array<i64: 2, 8, 256>}, {pipeline_mode = #tpu.pipeline_mode<synchronous>, transform_indices = @transform_2, window_bounds = array<i64: 16, 8>}, {pipeline_mode = #tpu.pipeline_mode<synchronous>, transform_indices = @transform_3, window_bounds = array<i64: 16, 8>}, {pipeline_mode = #tpu.pipeline_mode<synchronous>, transform_indices = @transform_4, window_bounds = array<i64: 16, 2>}, {pipeline_mode = #tpu.pipeline_mode<synchronous>, transform_indices = @transform_5, window_bounds = array<i64: 14, 256>}, {transform_indices = @transform_6, window_bounds = array<i64: 100>}, {transform_indices = @transform_7, window_bounds = array<i64: 2, 8, 256>}]} {
    %c0 = arith.constant 0 : index
    %c0_0 = arith.constant 0 : index
    %c0_1 = arith.constant 0 : index
    %0 = vector.load %arg2[%c0, %c0_0, %c0_1] : memref<2x8x256xf32, #tpu.memory_space<vmem>>, vector<2x8x256xf32>
    %cst = arith.constant dense<0.000000e+00> : vector<2x256xf32>
    %1 = vector.multi_reduction <add>, %0, %cst [1] : vector<2x8x256xf32> to vector<2x256xf32>
    %cst_2 = arith.constant 8.000000e+00 : f32
    %2 = vector.broadcast %cst_2 : f32 to vector<2x256xf32>
    %3 = arith.divf %1, %2 : vector<2x256xf32>
    %cst_3 = arith.constant dense<0xFF800000> : vector<2x256xf32>
    %4 = vector.multi_reduction <maximumf>, %0, %cst_3 [1] : vector<2x8x256xf32> to vector<2x256xf32>
    %c0_4 = arith.constant 0 : index
    %c0_5 = arith.constant 0 : index
    %5 = vector.load %arg6[%c0_4, %c0_5] : memref<14x256xf32, #tpu.memory_space<vmem>>, vector<1x256xf32>
    %c48_i32 = arith.constant 48 : i32
    %6 = tpu.dynamic_rotate %3 by %c48_i32 dim 1 : vector<2x256xf32>, i32 -> vector<2x256xf32>
    %7 = vector.broadcast %5 : vector<1x256xf32> to vector<2x256xf32>
    %8 = arith.mulf %7, %6 : vector<2x256xf32>
    %c48_i32_6 = arith.constant 48 : i32
    %9 = tpu.dynamic_rotate %4 by %c48_i32_6 dim 1 : vector<2x256xf32>, i32 -> vector<2x256xf32>
    %10 = vector.broadcast %5 : vector<1x256xf32> to vector<2x256xf32>
    %11 = arith.mulf %10, %9 : vector<2x256xf32>
    %c1 = arith.constant 1 : index
    %c0_7 = arith.constant 0 : index
    %12 = vector.load %arg6[%c1, %c0_7] : memref<14x256xf32, #tpu.memory_space<vmem>>, vector<1x256xf32>
    %c32_i32 = arith.constant 32 : i32
    %13 = tpu.dynamic_rotate %3 by %c32_i32 dim 1 : vector<2x256xf32>, i32 -> vector<2x256xf32>
    %14 = vector.broadcast %12 : vector<1x256xf32> to vector<2x256xf32>
    %15 = arith.mulf %14, %13 : vector<2x256xf32>
    %c32_i32_8 = arith.constant 32 : i32
    %16 = tpu.dynamic_rotate %4 by %c32_i32_8 dim 1 : vector<2x256xf32>, i32 -> vector<2x256xf32>
    %17 = vector.broadcast %12 : vector<1x256xf32> to vector<2x256xf32>
    %18 = arith.mulf %17, %16 : vector<2x256xf32>
    %c2 = arith.constant 2 : index
    %c0_9 = arith.constant 0 : index
    %19 = vector.load %arg6[%c2, %c0_9] : memref<14x256xf32, #tpu.memory_space<vmem>>, vector<1x256xf32>
    %c16_i32 = arith.constant 16 : i32
    %20 = tpu.dynamic_rotate %3 by %c16_i32 dim 1 : vector<2x256xf32>, i32 -> vector<2x256xf32>
    %21 = vector.broadcast %19 : vector<1x256xf32> to vector<2x256xf32>
    %22 = arith.mulf %21, %20 : vector<2x256xf32>
    %c16_i32_10 = arith.constant 16 : i32
    %23 = tpu.dynamic_rotate %4 by %c16_i32_10 dim 1 : vector<2x256xf32>, i32 -> vector<2x256xf32>
    %24 = vector.broadcast %19 : vector<1x256xf32> to vector<2x256xf32>
    %25 = arith.mulf %24, %23 : vector<2x256xf32>
    %c4 = arith.constant 4 : index
    %c0_11 = arith.constant 0 : index
    %26 = vector.load %arg6[%c4, %c0_11] : memref<14x256xf32, #tpu.memory_space<vmem>>, vector<1x256xf32>
    %c240_i32 = arith.constant 240 : i32
    %27 = tpu.dynamic_rotate %3 by %c240_i32 dim 1 : vector<2x256xf32>, i32 -> vector<2x256xf32>
    %28 = vector.broadcast %26 : vector<1x256xf32> to vector<2x256xf32>
    %29 = arith.mulf %28, %27 : vector<2x256xf32>
    %c240_i32_12 = arith.constant 240 : i32
    %30 = tpu.dynamic_rotate %4 by %c240_i32_12 dim 1 : vector<2x256xf32>, i32 -> vector<2x256xf32>
    %31 = vector.broadcast %26 : vector<1x256xf32> to vector<2x256xf32>
    %32 = arith.mulf %31, %30 : vector<2x256xf32>
    %c5 = arith.constant 5 : index
    %c0_13 = arith.constant 0 : index
    %33 = vector.load %arg6[%c5, %c0_13] : memref<14x256xf32, #tpu.memory_space<vmem>>, vector<1x256xf32>
    %c224_i32 = arith.constant 224 : i32
    %34 = tpu.dynamic_rotate %3 by %c224_i32 dim 1 : vector<2x256xf32>, i32 -> vector<2x256xf32>
    %35 = vector.broadcast %33 : vector<1x256xf32> to vector<2x256xf32>
    %36 = arith.mulf %35, %34 : vector<2x256xf32>
    %c224_i32_14 = arith.constant 224 : i32
    %37 = tpu.dynamic_rotate %4 by %c224_i32_14 dim 1 : vector<2x256xf32>, i32 -> vector<2x256xf32>
    %38 = vector.broadcast %33 : vector<1x256xf32> to vector<2x256xf32>
    %39 = arith.mulf %38, %37 : vector<2x256xf32>
    %c6 = arith.constant 6 : index
    %c0_15 = arith.constant 0 : index
    %40 = vector.load %arg6[%c6, %c0_15] : memref<14x256xf32, #tpu.memory_space<vmem>>, vector<1x256xf32>
    %c208_i32 = arith.constant 208 : i32
    %41 = tpu.dynamic_rotate %3 by %c208_i32 dim 1 : vector<2x256xf32>, i32 -> vector<2x256xf32>
    %42 = vector.broadcast %40 : vector<1x256xf32> to vector<2x256xf32>
    %43 = arith.mulf %42, %41 : vector<2x256xf32>
    %c208_i32_16 = arith.constant 208 : i32
    %44 = tpu.dynamic_rotate %4 by %c208_i32_16 dim 1 : vector<2x256xf32>, i32 -> vector<2x256xf32>
    %45 = vector.broadcast %40 : vector<1x256xf32> to vector<2x256xf32>
    %46 = arith.mulf %45, %44 : vector<2x256xf32>
    %cst_17 = arith.constant 0.000000e+00 : f32
    %47 = vector.broadcast %cst_17 : f32 to vector<2x256xf32>
    %cst_18 = arith.constant 0.000000e+00 : f32
    %48 = vector.broadcast %cst_18 : f32 to vector<2x256xf32>
    %c0_19 = arith.constant 0 : index
    %49 = memref.load %arg7[%c0_19] : memref<100xf32, #tpu.memory_space<smem>>
    %c49 = arith.constant 49 : index
    %50 = memref.load %arg7[%c49] : memref<100xf32, #tpu.memory_space<smem>>
    %51 = vector.broadcast %49 : f32 to vector<2x256xf32>
    %52 = arith.mulf %51, %8 : vector<2x256xf32>
    %53 = arith.addf %48, %52 : vector<2x256xf32>
    %54 = vector.broadcast %50 : f32 to vector<2x256xf32>
    %55 = arith.mulf %54, %11 : vector<2x256xf32>
    %56 = arith.addf %53, %55 : vector<2x256xf32>
    %c7 = arith.constant 7 : index
    %57 = memref.load %arg7[%c7] : memref<100xf32, #tpu.memory_space<smem>>
    %c56 = arith.constant 56 : index
    %58 = memref.load %arg7[%c56] : memref<100xf32, #tpu.memory_space<smem>>
    %59 = vector.broadcast %57 : f32 to vector<2x256xf32>
    %60 = arith.mulf %59, %15 : vector<2x256xf32>
    %61 = arith.addf %56, %60 : vector<2x256xf32>
    %62 = vector.broadcast %58 : f32 to vector<2x256xf32>
    %63 = arith.mulf %62, %18 : vector<2x256xf32>
    %64 = arith.addf %61, %63 : vector<2x256xf32>
    %c14 = arith.constant 14 : index
    %65 = memref.load %arg7[%c14] : memref<100xf32, #tpu.memory_space<smem>>
    %c63 = arith.constant 63 : index
    %66 = memref.load %arg7[%c63] : memref<100xf32, #tpu.memory_space<smem>>
    %67 = vector.broadcast %65 : f32 to vector<2x256xf32>
    %68 = arith.mulf %67, %22 : vector<2x256xf32>
    %69 = arith.addf %64, %68 : vector<2x256xf32>
    %70 = vector.broadcast %66 : f32 to vector<2x256xf32>
    %71 = arith.mulf %70, %25 : vector<2x256xf32>
    %72 = arith.addf %69, %71 : vector<2x256xf32>
    %c21 = arith.constant 21 : index
    %73 = memref.load %arg7[%c21] : memref<100xf32, #tpu.memory_space<smem>>
    %c70 = arith.constant 70 : index
    %74 = memref.load %arg7[%c70] : memref<100xf32, #tpu.memory_space<smem>>
    %75 = vector.broadcast %73 : f32 to vector<2x256xf32>
    %76 = arith.mulf %75, %3 : vector<2x256xf32>
    %77 = arith.addf %72, %76 : vector<2x256xf32>
    %78 = vector.broadcast %74 : f32 to vector<2x256xf32>
    %79 = arith.mulf %78, %4 : vector<2x256xf32>
    %80 = arith.addf %77, %79 : vector<2x256xf32>
    %c28 = arith.constant 28 : index
    %81 = memref.load %arg7[%c28] : memref<100xf32, #tpu.memory_space<smem>>
    %c77 = arith.constant 77 : index
    %82 = memref.load %arg7[%c77] : memref<100xf32, #tpu.memory_space<smem>>
    %83 = vector.broadcast %81 : f32 to vector<2x256xf32>
    %84 = arith.mulf %83, %29 : vector<2x256xf32>
    %85 = arith.addf %80, %84 : vector<2x256xf32>
    %86 = vector.broadcast %82 : f32 to vector<2x256xf32>
    %87 = arith.mulf %86, %32 : vector<2x256xf32>
    %88 = arith.addf %85, %87 : vector<2x256xf32>
    %c35 = arith.constant 35 : index
    %89 = memref.load %arg7[%c35] : memref<100xf32, #tpu.memory_space<smem>>
    %c84 = arith.constant 84 : index
    %90 = memref.load %arg7[%c84] : memref<100xf32, #tpu.memory_space<smem>>
    %91 = vector.broadcast %89 : f32 to vector<2x256xf32>
    %92 = arith.mulf %91, %36 : vector<2x256xf32>
    %93 = arith.addf %88, %92 : vector<2x256xf32>
    %94 = vector.broadcast %90 : f32 to vector<2x256xf32>
    %95 = arith.mulf %94, %39 : vector<2x256xf32>
    %96 = arith.addf %93, %95 : vector<2x256xf32>
    %c42 = arith.constant 42 : index
    %97 = memref.load %arg7[%c42] : memref<100xf32, #tpu.memory_space<smem>>
    %c91 = arith.constant 91 : index
    %98 = memref.load %arg7[%c91] : memref<100xf32, #tpu.memory_space<smem>>
    %99 = vector.broadcast %97 : f32 to vector<2x256xf32>
    %100 = arith.mulf %99, %43 : vector<2x256xf32>
    %101 = arith.addf %96, %100 : vector<2x256xf32>
    %102 = vector.broadcast %98 : f32 to vector<2x256xf32>
    %103 = arith.mulf %102, %46 : vector<2x256xf32>
    %104 = arith.addf %101, %103 : vector<2x256xf32>
    %c3_i32 = arith.constant 3 : i32
    %105 = tpu.dynamic_rotate %104 by %c3_i32 dim 1 : vector<2x256xf32>, i32 -> vector<2x256xf32>
    %c7_20 = arith.constant 7 : index
    %c0_21 = arith.constant 0 : index
    %106 = vector.load %arg6[%c7_20, %c0_21] : memref<14x256xf32, #tpu.memory_space<vmem>>, vector<1x256xf32>
    %107 = vector.broadcast %106 : vector<1x256xf32> to vector<2x256xf32>
    %108 = arith.mulf %107, %105 : vector<2x256xf32>
    %109 = arith.addf %47, %108 : vector<2x256xf32>
    %cst_22 = arith.constant 0.000000e+00 : f32
    %110 = vector.broadcast %cst_22 : f32 to vector<2x256xf32>
    %c1_23 = arith.constant 1 : index
    %111 = memref.load %arg7[%c1_23] : memref<100xf32, #tpu.memory_space<smem>>
    %c50 = arith.constant 50 : index
    %112 = memref.load %arg7[%c50] : memref<100xf32, #tpu.memory_space<smem>>
    %113 = vector.broadcast %111 : f32 to vector<2x256xf32>
    %114 = arith.mulf %113, %8 : vector<2x256xf32>
    %115 = arith.addf %110, %114 : vector<2x256xf32>
    %116 = vector.broadcast %112 : f32 to vector<2x256xf32>
    %117 = arith.mulf %116, %11 : vector<2x256xf32>
    %118 = arith.addf %115, %117 : vector<2x256xf32>
    %c8 = arith.constant 8 : index
    %119 = memref.load %arg7[%c8] : memref<100xf32, #tpu.memory_space<smem>>
    %c57 = arith.constant 57 : index
    %120 = memref.load %arg7[%c57] : memref<100xf32, #tpu.memory_space<smem>>
    %121 = vector.broadcast %119 : f32 to vector<2x256xf32>
    %122 = arith.mulf %121, %15 : vector<2x256xf32>
    %123 = arith.addf %118, %122 : vector<2x256xf32>
    %124 = vector.broadcast %120 : f32 to vector<2x256xf32>
    %125 = arith.mulf %124, %18 : vector<2x256xf32>
    %126 = arith.addf %123, %125 : vector<2x256xf32>
    %c15 = arith.constant 15 : index
    %127 = memref.load %arg7[%c15] : memref<100xf32, #tpu.memory_space<smem>>
    %c64 = arith.constant 64 : index
    %128 = memref.load %arg7[%c64] : memref<100xf32, #tpu.memory_space<smem>>
    %129 = vector.broadcast %127 : f32 to vector<2x256xf32>
    %130 = arith.mulf %129, %22 : vector<2x256xf32>
    %131 = arith.addf %126, %130 : vector<2x256xf32>
    %132 = vector.broadcast %128 : f32 to vector<2x256xf32>
    %133 = arith.mulf %132, %25 : vector<2x256xf32>
    %134 = arith.addf %131, %133 : vector<2x256xf32>
    %c22 = arith.constant 22 : index
    %135 = memref.load %arg7[%c22] : memref<100xf32, #tpu.memory_space<smem>>
    %c71 = arith.constant 71 : index
    %136 = memref.load %arg7[%c71] : memref<100xf32, #tpu.memory_space<smem>>
    %137 = vector.broadcast %135 : f32 to vector<2x256xf32>
    %138 = arith.mulf %137, %3 : vector<2x256xf32>
    %139 = arith.addf %134, %138 : vector<2x256xf32>
    %140 = vector.broadcast %136 : f32 to vector<2x256xf32>
    %141 = arith.mulf %140, %4 : vector<2x256xf32>
    %142 = arith.addf %139, %141 : vector<2x256xf32>
    %c29 = arith.constant 29 : index
    %143 = memref.load %arg7[%c29] : memref<100xf32, #tpu.memory_space<smem>>
    %c78 = arith.constant 78 : index
    %144 = memref.load %arg7[%c78] : memref<100xf32, #tpu.memory_space<smem>>
    %145 = vector.broadcast %143 : f32 to vector<2x256xf32>
    %146 = arith.mulf %145, %29 : vector<2x256xf32>
    %147 = arith.addf %142, %146 : vector<2x256xf32>
    %148 = vector.broadcast %144 : f32 to vector<2x256xf32>
    %149 = arith.mulf %148, %32 : vector<2x256xf32>
    %150 = arith.addf %147, %149 : vector<2x256xf32>
    %c36 = arith.constant 36 : index
    %151 = memref.load %arg7[%c36] : memref<100xf32, #tpu.memory_space<smem>>
    %c85 = arith.constant 85 : index
    %152 = memref.load %arg7[%c85] : memref<100xf32, #tpu.memory_space<smem>>
    %153 = vector.broadcast %151 : f32 to vector<2x256xf32>
    %154 = arith.mulf %153, %36 : vector<2x256xf32>
    %155 = arith.addf %150, %154 : vector<2x256xf32>
    %156 = vector.broadcast %152 : f32 to vector<2x256xf32>
    %157 = arith.mulf %156, %39 : vector<2x256xf32>
    %158 = arith.addf %155, %157 : vector<2x256xf32>
    %c43 = arith.constant 43 : index
    %159 = memref.load %arg7[%c43] : memref<100xf32, #tpu.memory_space<smem>>
    %c92 = arith.constant 92 : index
    %160 = memref.load %arg7[%c92] : memref<100xf32, #tpu.memory_space<smem>>
    %161 = vector.broadcast %159 : f32 to vector<2x256xf32>
    %162 = arith.mulf %161, %43 : vector<2x256xf32>
    %163 = arith.addf %158, %162 : vector<2x256xf32>
    %164 = vector.broadcast %160 : f32 to vector<2x256xf32>
    %165 = arith.mulf %164, %46 : vector<2x256xf32>
    %166 = arith.addf %163, %165 : vector<2x256xf32>
    %c2_i32 = arith.constant 2 : i32
    %167 = tpu.dynamic_rotate %166 by %c2_i32 dim 1 : vector<2x256xf32>, i32 -> vector<2x256xf32>
    %c8_24 = arith.constant 8 : index
    %c0_25 = arith.constant 0 : index
    %168 = vector.load %arg6[%c8_24, %c0_25] : memref<14x256xf32, #tpu.memory_space<vmem>>, vector<1x256xf32>
    %169 = vector.broadcast %168 : vector<1x256xf32> to vector<2x256xf32>
    %170 = arith.mulf %169, %167 : vector<2x256xf32>
    %171 = arith.addf %109, %170 : vector<2x256xf32>
    %cst_26 = arith.constant 0.000000e+00 : f32
    %172 = vector.broadcast %cst_26 : f32 to vector<2x256xf32>
    %c2_27 = arith.constant 2 : index
    %173 = memref.load %arg7[%c2_27] : memref<100xf32, #tpu.memory_space<smem>>
    %c51 = arith.constant 51 : index
    %174 = memref.load %arg7[%c51] : memref<100xf32, #tpu.memory_space<smem>>
    %175 = vector.broadcast %173 : f32 to vector<2x256xf32>
    %176 = arith.mulf %175, %8 : vector<2x256xf32>
    %177 = arith.addf %172, %176 : vector<2x256xf32>
    %178 = vector.broadcast %174 : f32 to vector<2x256xf32>
    %179 = arith.mulf %178, %11 : vector<2x256xf32>
    %180 = arith.addf %177, %179 : vector<2x256xf32>
    %c9 = arith.constant 9 : index
    %181 = memref.load %arg7[%c9] : memref<100xf32, #tpu.memory_space<smem>>
    %c58 = arith.constant 58 : index
    %182 = memref.load %arg7[%c58] : memref<100xf32, #tpu.memory_space<smem>>
    %183 = vector.broadcast %181 : f32 to vector<2x256xf32>
    %184 = arith.mulf %183, %15 : vector<2x256xf32>
    %185 = arith.addf %180, %184 : vector<2x256xf32>
    %186 = vector.broadcast %182 : f32 to vector<2x256xf32>
    %187 = arith.mulf %186, %18 : vector<2x256xf32>
    %188 = arith.addf %185, %187 : vector<2x256xf32>
    %c16 = arith.constant 16 : index
    %189 = memref.load %arg7[%c16] : memref<100xf32, #tpu.memory_space<smem>>
    %c65 = arith.constant 65 : index
    %190 = memref.load %arg7[%c65] : memref<100xf32, #tpu.memory_space<smem>>
    %191 = vector.broadcast %189 : f32 to vector<2x256xf32>
    %192 = arith.mulf %191, %22 : vector<2x256xf32>
    %193 = arith.addf %188, %192 : vector<2x256xf32>
    %194 = vector.broadcast %190 : f32 to vector<2x256xf32>
    %195 = arith.mulf %194, %25 : vector<2x256xf32>
    %196 = arith.addf %193, %195 : vector<2x256xf32>
    %c23 = arith.constant 23 : index
    %197 = memref.load %arg7[%c23] : memref<100xf32, #tpu.memory_space<smem>>
    %c72 = arith.constant 72 : index
    %198 = memref.load %arg7[%c72] : memref<100xf32, #tpu.memory_space<smem>>
    %199 = vector.broadcast %197 : f32 to vector<2x256xf32>
    %200 = arith.mulf %199, %3 : vector<2x256xf32>
    %201 = arith.addf %196, %200 : vector<2x256xf32>
    %202 = vector.broadcast %198 : f32 to vector<2x256xf32>
    %203 = arith.mulf %202, %4 : vector<2x256xf32>
    %204 = arith.addf %201, %203 : vector<2x256xf32>
    %c30 = arith.constant 30 : index
    %205 = memref.load %arg7[%c30] : memref<100xf32, #tpu.memory_space<smem>>
    %c79 = arith.constant 79 : index
    %206 = memref.load %arg7[%c79] : memref<100xf32, #tpu.memory_space<smem>>
    %207 = vector.broadcast %205 : f32 to vector<2x256xf32>
    %208 = arith.mulf %207, %29 : vector<2x256xf32>
    %209 = arith.addf %204, %208 : vector<2x256xf32>
    %210 = vector.broadcast %206 : f32 to vector<2x256xf32>
    %211 = arith.mulf %210, %32 : vector<2x256xf32>
    %212 = arith.addf %209, %211 : vector<2x256xf32>
    %c37 = arith.constant 37 : index
    %213 = memref.load %arg7[%c37] : memref<100xf32, #tpu.memory_space<smem>>
    %c86 = arith.constant 86 : index
    %214 = memref.load %arg7[%c86] : memref<100xf32, #tpu.memory_space<smem>>
    %215 = vector.broadcast %213 : f32 to vector<2x256xf32>
    %216 = arith.mulf %215, %36 : vector<2x256xf32>
    %217 = arith.addf %212, %216 : vector<2x256xf32>
    %218 = vector.broadcast %214 : f32 to vector<2x256xf32>
    %219 = arith.mulf %218, %39 : vector<2x256xf32>
    %220 = arith.addf %217, %219 : vector<2x256xf32>
    %c44 = arith.constant 44 : index
    %221 = memref.load %arg7[%c44] : memref<100xf32, #tpu.memory_space<smem>>
    %c93 = arith.constant 93 : index
    %222 = memref.load %arg7[%c93] : memref<100xf32, #tpu.memory_space<smem>>
    %223 = vector.broadcast %221 : f32 to vector<2x256xf32>
    %224 = arith.mulf %223, %43 : vector<2x256xf32>
    %225 = arith.addf %220, %224 : vector<2x256xf32>
    %226 = vector.broadcast %222 : f32 to vector<2x256xf32>
    %227 = arith.mulf %226, %46 : vector<2x256xf32>
    %228 = arith.addf %225, %227 : vector<2x256xf32>
    %c1_i32 = arith.constant 1 : i32
    %229 = tpu.dynamic_rotate %228 by %c1_i32 dim 1 : vector<2x256xf32>, i32 -> vector<2x256xf32>
    %c9_28 = arith.constant 9 : index
    %c0_29 = arith.constant 0 : index
    %230 = vector.load %arg6[%c9_28, %c0_29] : memref<14x256xf32, #tpu.memory_space<vmem>>, vector<1x256xf32>
    %231 = vector.broadcast %230 : vector<1x256xf32> to vector<2x256xf32>
    %232 = arith.mulf %231, %229 : vector<2x256xf32>
    %233 = arith.addf %171, %232 : vector<2x256xf32>
    %cst_30 = arith.constant 0.000000e+00 : f32
    %234 = vector.broadcast %cst_30 : f32 to vector<2x256xf32>
    %c3 = arith.constant 3 : index
    %235 = memref.load %arg7[%c3] : memref<100xf32, #tpu.memory_space<smem>>
    %c52 = arith.constant 52 : index
    %236 = memref.load %arg7[%c52] : memref<100xf32, #tpu.memory_space<smem>>
    %237 = vector.broadcast %235 : f32 to vector<2x256xf32>
    %238 = arith.mulf %237, %8 : vector<2x256xf32>
    %239 = arith.addf %234, %238 : vector<2x256xf32>
    %240 = vector.broadcast %236 : f32 to vector<2x256xf32>
    %241 = arith.mulf %240, %11 : vector<2x256xf32>
    %242 = arith.addf %239, %241 : vector<2x256xf32>
    %c10 = arith.constant 10 : index
    %243 = memref.load %arg7[%c10] : memref<100xf32, #tpu.memory_space<smem>>
    %c59 = arith.constant 59 : index
    %244 = memref.load %arg7[%c59] : memref<100xf32, #tpu.memory_space<smem>>
    %245 = vector.broadcast %243 : f32 to vector<2x256xf32>
    %246 = arith.mulf %245, %15 : vector<2x256xf32>
    %247 = arith.addf %242, %246 : vector<2x256xf32>
    %248 = vector.broadcast %244 : f32 to vector<2x256xf32>
    %249 = arith.mulf %248, %18 : vector<2x256xf32>
    %250 = arith.addf %247, %249 : vector<2x256xf32>
    %c17 = arith.constant 17 : index
    %251 = memref.load %arg7[%c17] : memref<100xf32, #tpu.memory_space<smem>>
    %c66 = arith.constant 66 : index
    %252 = memref.load %arg7[%c66] : memref<100xf32, #tpu.memory_space<smem>>
    %253 = vector.broadcast %251 : f32 to vector<2x256xf32>
    %254 = arith.mulf %253, %22 : vector<2x256xf32>
    %255 = arith.addf %250, %254 : vector<2x256xf32>
    %256 = vector.broadcast %252 : f32 to vector<2x256xf32>
    %257 = arith.mulf %256, %25 : vector<2x256xf32>
    %258 = arith.addf %255, %257 : vector<2x256xf32>
    %c24 = arith.constant 24 : index
    %259 = memref.load %arg7[%c24] : memref<100xf32, #tpu.memory_space<smem>>
    %c73 = arith.constant 73 : index
    %260 = memref.load %arg7[%c73] : memref<100xf32, #tpu.memory_space<smem>>
    %261 = vector.broadcast %259 : f32 to vector<2x256xf32>
    %262 = arith.mulf %261, %3 : vector<2x256xf32>
    %263 = arith.addf %258, %262 : vector<2x256xf32>
    %264 = vector.broadcast %260 : f32 to vector<2x256xf32>
    %265 = arith.mulf %264, %4 : vector<2x256xf32>
    %266 = arith.addf %263, %265 : vector<2x256xf32>
    %c31 = arith.constant 31 : index
    %267 = memref.load %arg7[%c31] : memref<100xf32, #tpu.memory_space<smem>>
    %c80 = arith.constant 80 : index
    %268 = memref.load %arg7[%c80] : memref<100xf32, #tpu.memory_space<smem>>
    %269 = vector.broadcast %267 : f32 to vector<2x256xf32>
    %270 = arith.mulf %269, %29 : vector<2x256xf32>
    %271 = arith.addf %266, %270 : vector<2x256xf32>
    %272 = vector.broadcast %268 : f32 to vector<2x256xf32>
    %273 = arith.mulf %272, %32 : vector<2x256xf32>
    %274 = arith.addf %271, %273 : vector<2x256xf32>
    %c38 = arith.constant 38 : index
    %275 = memref.load %arg7[%c38] : memref<100xf32, #tpu.memory_space<smem>>
    %c87 = arith.constant 87 : index
    %276 = memref.load %arg7[%c87] : memref<100xf32, #tpu.memory_space<smem>>
    %277 = vector.broadcast %275 : f32 to vector<2x256xf32>
    %278 = arith.mulf %277, %36 : vector<2x256xf32>
    %279 = arith.addf %274, %278 : vector<2x256xf32>
    %280 = vector.broadcast %276 : f32 to vector<2x256xf32>
    %281 = arith.mulf %280, %39 : vector<2x256xf32>
    %282 = arith.addf %279, %281 : vector<2x256xf32>
    %c45 = arith.constant 45 : index
    %283 = memref.load %arg7[%c45] : memref<100xf32, #tpu.memory_space<smem>>
    %c94 = arith.constant 94 : index
    %284 = memref.load %arg7[%c94] : memref<100xf32, #tpu.memory_space<smem>>
    %285 = vector.broadcast %283 : f32 to vector<2x256xf32>
    %286 = arith.mulf %285, %43 : vector<2x256xf32>
    %287 = arith.addf %282, %286 : vector<2x256xf32>
    %288 = vector.broadcast %284 : f32 to vector<2x256xf32>
    %289 = arith.mulf %288, %46 : vector<2x256xf32>
    %290 = arith.addf %287, %289 : vector<2x256xf32>
    %c10_31 = arith.constant 10 : index
    %c0_32 = arith.constant 0 : index
    %291 = vector.load %arg6[%c10_31, %c0_32] : memref<14x256xf32, #tpu.memory_space<vmem>>, vector<1x256xf32>
    %292 = vector.broadcast %291 : vector<1x256xf32> to vector<2x256xf32>
    %293 = arith.mulf %292, %290 : vector<2x256xf32>
    %294 = arith.addf %233, %293 : vector<2x256xf32>
    %cst_33 = arith.constant 0.000000e+00 : f32
    %295 = vector.broadcast %cst_33 : f32 to vector<2x256xf32>
    %c4_34 = arith.constant 4 : index
    %296 = memref.load %arg7[%c4_34] : memref<100xf32, #tpu.memory_space<smem>>
    %c53 = arith.constant 53 : index
    %297 = memref.load %arg7[%c53] : memref<100xf32, #tpu.memory_space<smem>>
    %298 = vector.broadcast %296 : f32 to vector<2x256xf32>
    %299 = arith.mulf %298, %8 : vector<2x256xf32>
    %300 = arith.addf %295, %299 : vector<2x256xf32>
    %301 = vector.broadcast %297 : f32 to vector<2x256xf32>
    %302 = arith.mulf %301, %11 : vector<2x256xf32>
    %303 = arith.addf %300, %302 : vector<2x256xf32>
    %c11 = arith.constant 11 : index
    %304 = memref.load %arg7[%c11] : memref<100xf32, #tpu.memory_space<smem>>
    %c60 = arith.constant 60 : index
    %305 = memref.load %arg7[%c60] : memref<100xf32, #tpu.memory_space<smem>>
    %306 = vector.broadcast %304 : f32 to vector<2x256xf32>
    %307 = arith.mulf %306, %15 : vector<2x256xf32>
    %308 = arith.addf %303, %307 : vector<2x256xf32>
    %309 = vector.broadcast %305 : f32 to vector<2x256xf32>
    %310 = arith.mulf %309, %18 : vector<2x256xf32>
    %311 = arith.addf %308, %310 : vector<2x256xf32>
    %c18 = arith.constant 18 : index
    %312 = memref.load %arg7[%c18] : memref<100xf32, #tpu.memory_space<smem>>
    %c67 = arith.constant 67 : index
    %313 = memref.load %arg7[%c67] : memref<100xf32, #tpu.memory_space<smem>>
    %314 = vector.broadcast %312 : f32 to vector<2x256xf32>
    %315 = arith.mulf %314, %22 : vector<2x256xf32>
    %316 = arith.addf %311, %315 : vector<2x256xf32>
    %317 = vector.broadcast %313 : f32 to vector<2x256xf32>
    %318 = arith.mulf %317, %25 : vector<2x256xf32>
    %319 = arith.addf %316, %318 : vector<2x256xf32>
    %c25 = arith.constant 25 : index
    %320 = memref.load %arg7[%c25] : memref<100xf32, #tpu.memory_space<smem>>
    %c74 = arith.constant 74 : index
    %321 = memref.load %arg7[%c74] : memref<100xf32, #tpu.memory_space<smem>>
    %322 = vector.broadcast %320 : f32 to vector<2x256xf32>
    %323 = arith.mulf %322, %3 : vector<2x256xf32>
    %324 = arith.addf %319, %323 : vector<2x256xf32>
    %325 = vector.broadcast %321 : f32 to vector<2x256xf32>
    %326 = arith.mulf %325, %4 : vector<2x256xf32>
    %327 = arith.addf %324, %326 : vector<2x256xf32>
    %c32 = arith.constant 32 : index
    %328 = memref.load %arg7[%c32] : memref<100xf32, #tpu.memory_space<smem>>
    %c81 = arith.constant 81 : index
    %329 = memref.load %arg7[%c81] : memref<100xf32, #tpu.memory_space<smem>>
    %330 = vector.broadcast %328 : f32 to vector<2x256xf32>
    %331 = arith.mulf %330, %29 : vector<2x256xf32>
    %332 = arith.addf %327, %331 : vector<2x256xf32>
    %333 = vector.broadcast %329 : f32 to vector<2x256xf32>
    %334 = arith.mulf %333, %32 : vector<2x256xf32>
    %335 = arith.addf %332, %334 : vector<2x256xf32>
    %c39 = arith.constant 39 : index
    %336 = memref.load %arg7[%c39] : memref<100xf32, #tpu.memory_space<smem>>
    %c88 = arith.constant 88 : index
    %337 = memref.load %arg7[%c88] : memref<100xf32, #tpu.memory_space<smem>>
    %338 = vector.broadcast %336 : f32 to vector<2x256xf32>
    %339 = arith.mulf %338, %36 : vector<2x256xf32>
    %340 = arith.addf %335, %339 : vector<2x256xf32>
    %341 = vector.broadcast %337 : f32 to vector<2x256xf32>
    %342 = arith.mulf %341, %39 : vector<2x256xf32>
    %343 = arith.addf %340, %342 : vector<2x256xf32>
    %c46 = arith.constant 46 : index
    %344 = memref.load %arg7[%c46] : memref<100xf32, #tpu.memory_space<smem>>
    %c95 = arith.constant 95 : index
    %345 = memref.load %arg7[%c95] : memref<100xf32, #tpu.memory_space<smem>>
    %346 = vector.broadcast %344 : f32 to vector<2x256xf32>
    %347 = arith.mulf %346, %43 : vector<2x256xf32>
    %348 = arith.addf %343, %347 : vector<2x256xf32>
    %349 = vector.broadcast %345 : f32 to vector<2x256xf32>
    %350 = arith.mulf %349, %46 : vector<2x256xf32>
    %351 = arith.addf %348, %350 : vector<2x256xf32>
    %c255_i32 = arith.constant 255 : i32
    %352 = tpu.dynamic_rotate %351 by %c255_i32 dim 1 : vector<2x256xf32>, i32 -> vector<2x256xf32>
    %c11_35 = arith.constant 11 : index
    %c0_36 = arith.constant 0 : index
    %353 = vector.load %arg6[%c11_35, %c0_36] : memref<14x256xf32, #tpu.memory_space<vmem>>, vector<1x256xf32>
    %354 = vector.broadcast %353 : vector<1x256xf32> to vector<2x256xf32>
    %355 = arith.mulf %354, %352 : vector<2x256xf32>
    %356 = arith.addf %294, %355 : vector<2x256xf32>
    %cst_37 = arith.constant 0.000000e+00 : f32
    %357 = vector.broadcast %cst_37 : f32 to vector<2x256xf32>
    %c5_38 = arith.constant 5 : index
    %358 = memref.load %arg7[%c5_38] : memref<100xf32, #tpu.memory_space<smem>>
    %c54 = arith.constant 54 : index
    %359 = memref.load %arg7[%c54] : memref<100xf32, #tpu.memory_space<smem>>
    %360 = vector.broadcast %358 : f32 to vector<2x256xf32>
    %361 = arith.mulf %360, %8 : vector<2x256xf32>
    %362 = arith.addf %357, %361 : vector<2x256xf32>
    %363 = vector.broadcast %359 : f32 to vector<2x256xf32>
    %364 = arith.mulf %363, %11 : vector<2x256xf32>
    %365 = arith.addf %362, %364 : vector<2x256xf32>
    %c12 = arith.constant 12 : index
    %366 = memref.load %arg7[%c12] : memref<100xf32, #tpu.memory_space<smem>>
    %c61 = arith.constant 61 : index
    %367 = memref.load %arg7[%c61] : memref<100xf32, #tpu.memory_space<smem>>
    %368 = vector.broadcast %366 : f32 to vector<2x256xf32>
    %369 = arith.mulf %368, %15 : vector<2x256xf32>
    %370 = arith.addf %365, %369 : vector<2x256xf32>
    %371 = vector.broadcast %367 : f32 to vector<2x256xf32>
    %372 = arith.mulf %371, %18 : vector<2x256xf32>
    %373 = arith.addf %370, %372 : vector<2x256xf32>
    %c19 = arith.constant 19 : index
    %374 = memref.load %arg7[%c19] : memref<100xf32, #tpu.memory_space<smem>>
    %c68 = arith.constant 68 : index
    %375 = memref.load %arg7[%c68] : memref<100xf32, #tpu.memory_space<smem>>
    %376 = vector.broadcast %374 : f32 to vector<2x256xf32>
    %377 = arith.mulf %376, %22 : vector<2x256xf32>
    %378 = arith.addf %373, %377 : vector<2x256xf32>
    %379 = vector.broadcast %375 : f32 to vector<2x256xf32>
    %380 = arith.mulf %379, %25 : vector<2x256xf32>
    %381 = arith.addf %378, %380 : vector<2x256xf32>
    %c26 = arith.constant 26 : index
    %382 = memref.load %arg7[%c26] : memref<100xf32, #tpu.memory_space<smem>>
    %c75 = arith.constant 75 : index
    %383 = memref.load %arg7[%c75] : memref<100xf32, #tpu.memory_space<smem>>
    %384 = vector.broadcast %382 : f32 to vector<2x256xf32>
    %385 = arith.mulf %384, %3 : vector<2x256xf32>
    %386 = arith.addf %381, %385 : vector<2x256xf32>
    %387 = vector.broadcast %383 : f32 to vector<2x256xf32>
    %388 = arith.mulf %387, %4 : vector<2x256xf32>
    %389 = arith.addf %386, %388 : vector<2x256xf32>
    %c33 = arith.constant 33 : index
    %390 = memref.load %arg7[%c33] : memref<100xf32, #tpu.memory_space<smem>>
    %c82 = arith.constant 82 : index
    %391 = memref.load %arg7[%c82] : memref<100xf32, #tpu.memory_space<smem>>
    %392 = vector.broadcast %390 : f32 to vector<2x256xf32>
    %393 = arith.mulf %392, %29 : vector<2x256xf32>
    %394 = arith.addf %389, %393 : vector<2x256xf32>
    %395 = vector.broadcast %391 : f32 to vector<2x256xf32>
    %396 = arith.mulf %395, %32 : vector<2x256xf32>
    %397 = arith.addf %394, %396 : vector<2x256xf32>
    %c40 = arith.constant 40 : index
    %398 = memref.load %arg7[%c40] : memref<100xf32, #tpu.memory_space<smem>>
    %c89 = arith.constant 89 : index
    %399 = memref.load %arg7[%c89] : memref<100xf32, #tpu.memory_space<smem>>
    %400 = vector.broadcast %398 : f32 to vector<2x256xf32>
    %401 = arith.mulf %400, %36 : vector<2x256xf32>
    %402 = arith.addf %397, %401 : vector<2x256xf32>
    %403 = vector.broadcast %399 : f32 to vector<2x256xf32>
    %404 = arith.mulf %403, %39 : vector<2x256xf32>
    %405 = arith.addf %402, %404 : vector<2x256xf32>
    %c47 = arith.constant 47 : index
    %406 = memref.load %arg7[%c47] : memref<100xf32, #tpu.memory_space<smem>>
    %c96 = arith.constant 96 : index
    %407 = memref.load %arg7[%c96] : memref<100xf32, #tpu.memory_space<smem>>
    %408 = vector.broadcast %406 : f32 to vector<2x256xf32>
    %409 = arith.mulf %408, %43 : vector<2x256xf32>
    %410 = arith.addf %405, %409 : vector<2x256xf32>
    %411 = vector.broadcast %407 : f32 to vector<2x256xf32>
    %412 = arith.mulf %411, %46 : vector<2x256xf32>
    %413 = arith.addf %410, %412 : vector<2x256xf32>
    %c254_i32 = arith.constant 254 : i32
    %414 = tpu.dynamic_rotate %413 by %c254_i32 dim 1 : vector<2x256xf32>, i32 -> vector<2x256xf32>
    %c12_39 = arith.constant 12 : index
    %c0_40 = arith.constant 0 : index
    %415 = vector.load %arg6[%c12_39, %c0_40] : memref<14x256xf32, #tpu.memory_space<vmem>>, vector<1x256xf32>
    %416 = vector.broadcast %415 : vector<1x256xf32> to vector<2x256xf32>
    %417 = arith.mulf %416, %414 : vector<2x256xf32>
    %418 = arith.addf %356, %417 : vector<2x256xf32>
    %cst_41 = arith.constant 0.000000e+00 : f32
    %419 = vector.broadcast %cst_41 : f32 to vector<2x256xf32>
    %c6_42 = arith.constant 6 : index
    %420 = memref.load %arg7[%c6_42] : memref<100xf32, #tpu.memory_space<smem>>
    %c55 = arith.constant 55 : index
    %421 = memref.load %arg7[%c55] : memref<100xf32, #tpu.memory_space<smem>>
    %422 = vector.broadcast %420 : f32 to vector<2x256xf32>
    %423 = arith.mulf %422, %8 : vector<2x256xf32>
    %424 = arith.addf %419, %423 : vector<2x256xf32>
    %425 = vector.broadcast %421 : f32 to vector<2x256xf32>
    %426 = arith.mulf %425, %11 : vector<2x256xf32>
    %427 = arith.addf %424, %426 : vector<2x256xf32>
    %c13 = arith.constant 13 : index
    %428 = memref.load %arg7[%c13] : memref<100xf32, #tpu.memory_space<smem>>
    %c62 = arith.constant 62 : index
    %429 = memref.load %arg7[%c62] : memref<100xf32, #tpu.memory_space<smem>>
    %430 = vector.broadcast %428 : f32 to vector<2x256xf32>
    %431 = arith.mulf %430, %15 : vector<2x256xf32>
    %432 = arith.addf %427, %431 : vector<2x256xf32>
    %433 = vector.broadcast %429 : f32 to vector<2x256xf32>
    %434 = arith.mulf %433, %18 : vector<2x256xf32>
    %435 = arith.addf %432, %434 : vector<2x256xf32>
    %c20 = arith.constant 20 : index
    %436 = memref.load %arg7[%c20] : memref<100xf32, #tpu.memory_space<smem>>
    %c69 = arith.constant 69 : index
    %437 = memref.load %arg7[%c69] : memref<100xf32, #tpu.memory_space<smem>>
    %438 = vector.broadcast %436 : f32 to vector<2x256xf32>
    %439 = arith.mulf %438, %22 : vector<2x256xf32>
    %440 = arith.addf %435, %439 : vector<2x256xf32>
    %441 = vector.broadcast %437 : f32 to vector<2x256xf32>
    %442 = arith.mulf %441, %25 : vector<2x256xf32>
    %443 = arith.addf %440, %442 : vector<2x256xf32>
    %c27 = arith.constant 27 : index
    %444 = memref.load %arg7[%c27] : memref<100xf32, #tpu.memory_space<smem>>
    %c76 = arith.constant 76 : index
    %445 = memref.load %arg7[%c76] : memref<100xf32, #tpu.memory_space<smem>>
    %446 = vector.broadcast %444 : f32 to vector<2x256xf32>
    %447 = arith.mulf %446, %3 : vector<2x256xf32>
    %448 = arith.addf %443, %447 : vector<2x256xf32>
    %449 = vector.broadcast %445 : f32 to vector<2x256xf32>
    %450 = arith.mulf %449, %4 : vector<2x256xf32>
    %451 = arith.addf %448, %450 : vector<2x256xf32>
    %c34 = arith.constant 34 : index
    %452 = memref.load %arg7[%c34] : memref<100xf32, #tpu.memory_space<smem>>
    %c83 = arith.constant 83 : index
    %453 = memref.load %arg7[%c83] : memref<100xf32, #tpu.memory_space<smem>>
    %454 = vector.broadcast %452 : f32 to vector<2x256xf32>
    %455 = arith.mulf %454, %29 : vector<2x256xf32>
    %456 = arith.addf %451, %455 : vector<2x256xf32>
    %457 = vector.broadcast %453 : f32 to vector<2x256xf32>
    %458 = arith.mulf %457, %32 : vector<2x256xf32>
    %459 = arith.addf %456, %458 : vector<2x256xf32>
    %c41 = arith.constant 41 : index
    %460 = memref.load %arg7[%c41] : memref<100xf32, #tpu.memory_space<smem>>
    %c90 = arith.constant 90 : index
    %461 = memref.load %arg7[%c90] : memref<100xf32, #tpu.memory_space<smem>>
    %462 = vector.broadcast %460 : f32 to vector<2x256xf32>
    %463 = arith.mulf %462, %36 : vector<2x256xf32>
    %464 = arith.addf %459, %463 : vector<2x256xf32>
    %465 = vector.broadcast %461 : f32 to vector<2x256xf32>
    %466 = arith.mulf %465, %39 : vector<2x256xf32>
    %467 = arith.addf %464, %466 : vector<2x256xf32>
    %c48 = arith.constant 48 : index
    %468 = memref.load %arg7[%c48] : memref<100xf32, #tpu.memory_space<smem>>
    %c97 = arith.constant 97 : index
    %469 = memref.load %arg7[%c97] : memref<100xf32, #tpu.memory_space<smem>>
    %470 = vector.broadcast %468 : f32 to vector<2x256xf32>
    %471 = arith.mulf %470, %43 : vector<2x256xf32>
    %472 = arith.addf %467, %471 : vector<2x256xf32>
    %473 = vector.broadcast %469 : f32 to vector<2x256xf32>
    %474 = arith.mulf %473, %46 : vector<2x256xf32>
    %475 = arith.addf %472, %474 : vector<2x256xf32>
    %c253_i32 = arith.constant 253 : i32
    %476 = tpu.dynamic_rotate %475 by %c253_i32 dim 1 : vector<2x256xf32>, i32 -> vector<2x256xf32>
    %c13_43 = arith.constant 13 : index
    %c0_44 = arith.constant 0 : index
    %477 = vector.load %arg6[%c13_43, %c0_44] : memref<14x256xf32, #tpu.memory_space<vmem>>, vector<1x256xf32>
    %478 = vector.broadcast %477 : vector<1x256xf32> to vector<2x256xf32>
    %479 = arith.mulf %478, %476 : vector<2x256xf32>
    %480 = arith.addf %418, %479 : vector<2x256xf32>
    %c99 = arith.constant 99 : index
    %481 = memref.load %arg7[%c99] : memref<100xf32, #tpu.memory_space<smem>>
    %482 = vector.broadcast %481 : f32 to vector<2x256xf32>
    %483 = arith.addf %480, %482 : vector<2x256xf32>
    %cst_45 = arith.constant 0.000000e+00 : f32
    %484 = vector.broadcast %cst_45 : f32 to vector<2x256xf32>
    %485 = arith.subf %484, %483 : vector<2x256xf32>
    %486 = math.exp %485 : vector<2x256xf32>
    %cst_46 = arith.constant 1.000000e+00 : f32
    %487 = vector.broadcast %cst_46 : f32 to vector<2x256xf32>
    %488 = arith.addf %487, %486 : vector<2x256xf32>
    %489 = tpu.reciprocal %488 {approx = true} : vector<2x256xf32> -> vector<2x256xf32>
    %c0_47 = arith.constant 0 : index
    %c0_48 = arith.constant 0 : index
    %490 = vector.load %arg5[%c0_47, %c0_48] : memref<16x2xf32, #tpu.memory_space<vmem>>, vector<16x1xf32>
    %c0_49 = arith.constant 0 : index
    %c1_50 = arith.constant 1 : index
    %491 = vector.load %arg5[%c0_49, %c1_50] : memref<16x2xf32, #tpu.memory_space<vmem>>, vector<16x1xf32>
    %c0_51 = arith.constant 0 : index
    %c0_52 = arith.constant 0 : index
    %492 = vector.load %arg3[%c0_51, %c0_52] : memref<16x8xbf16, #tpu.memory_space<vmem>>, vector<16x8xbf16>
    %c0_53 = arith.constant 0 : index
    %c0_54 = arith.constant 0 : index
    %493 = vector.load %arg4[%c0_53, %c0_54] : memref<16x8xbf16, #tpu.memory_space<vmem>>, vector<16x8xbf16>
    %c0_55 = arith.constant 0 : index
    %c0_56 = arith.constant 0 : index
    %c0_57 = arith.constant 0 : index
    %494 = vector.load %arg1[%c0_55, %c0_56, %c0_57] : memref<2x8x256xbf16, #tpu.memory_space<vmem>>, vector<1x8x256xbf16>
    %495 = vector.shape_cast %494 : vector<1x8x256xbf16> to vector<8x256xbf16>
    %cst_58 = arith.constant dense<0.000000e+00> : vector<16x256xf32>
    %496 = tpu.matmul %492, %495, %cst_58 {dimension_numbers = #tpu.dot_dimension_numbers<[1], [0], [0], [1], [0, 0, 1, 1], [], []>} : vector<16x8xbf16>, vector<8x256xbf16>, vector<16x256xf32> -> vector<16x256xf32>
    %497 = vector.extract_strided_slice %0 {offsets = [0, 0, 0], sizes = [1, 8, 256], strides = [1, 1, 1]} : vector<2x8x256xf32> to vector<1x8x256xf32>
    %498 = vector.shape_cast %497 : vector<1x8x256xf32> to vector<8x256xf32>
    %499 = arith.truncf %498 : vector<8x256xf32> to vector<8x256xbf16>
    %cst_59 = arith.constant dense<0.000000e+00> : vector<16x256xf32>
    %500 = tpu.matmul %493, %499, %cst_59 {dimension_numbers = #tpu.dot_dimension_numbers<[1], [0], [0], [1], [0, 0, 1, 1], [], []>} : vector<16x8xbf16>, vector<8x256xbf16>, vector<16x256xf32> -> vector<16x256xf32>
    %501 = arith.addf %496, %500 : vector<16x256xf32>
    %502 = vector.broadcast %490 : vector<16x1xf32> to vector<16x256xf32>
    %503 = arith.addf %501, %502 : vector<16x256xf32>
    %cst_60 = arith.constant 0.000000e+00 : f32
    %504 = vector.broadcast %cst_60 : f32 to vector<16x256xf32>
    %505 = arith.maximumf %503, %504 : vector<16x256xf32>
    %506 = vector.broadcast %491 : vector<16x1xf32> to vector<16x256xf32>
    %507 = arith.mulf %505, %506 : vector<16x256xf32>
    %cst_61 = arith.constant dense<0.000000e+00> : vector<256xf32>
    %508 = vector.multi_reduction <add>, %507, %cst_61 [0] : vector<16x256xf32> to vector<256xf32>
    %509 = vector.shape_cast %508 : vector<256xf32> to vector<1x256xf32>
    %c98 = arith.constant 98 : index
    %510 = memref.load %arg7[%c98] : memref<100xf32, #tpu.memory_space<smem>>
    %511 = vector.broadcast %510 : f32 to vector<1x256xf32>
    %512 = arith.addf %509, %511 : vector<1x256xf32>
    %cst_62 = arith.constant 0.000000e+00 : f32
    %513 = vector.broadcast %cst_62 : f32 to vector<1x256xf32>
    %514 = arith.subf %513, %512 : vector<1x256xf32>
    %515 = math.exp %514 : vector<1x256xf32>
    %cst_63 = arith.constant 1.000000e+00 : f32
    %516 = vector.broadcast %cst_63 : f32 to vector<1x256xf32>
    %517 = arith.addf %516, %515 : vector<1x256xf32>
    %518 = tpu.reciprocal %517 {approx = true} : vector<1x256xf32> -> vector<1x256xf32>
    %519 = vector.extract_strided_slice %0 {offsets = [0, 0, 0], sizes = [1, 8, 256], strides = [1, 1, 1]} : vector<2x8x256xf32> to vector<1x8x256xf32>
    %520 = vector.shape_cast %519 : vector<1x8x256xf32> to vector<8x256xf32>
    %521 = vector.extract_strided_slice %489 {offsets = [0, 0], sizes = [1, 256], strides = [1, 1]} : vector<2x256xf32> to vector<1x256xf32>
    %522 = arith.mulf %518, %521 : vector<1x256xf32>
    %523 = vector.broadcast %522 : vector<1x256xf32> to vector<8x256xf32>
    %524 = arith.mulf %520, %523 : vector<8x256xf32>
    %c0_64 = arith.constant 0 : index
    %c0_65 = arith.constant 0 : index
    %c0_66 = arith.constant 0 : index
    %525 = vector.load %arg8[%c0_64, %c0_65, %c0_66] : memref<2x8x256xf32, #tpu.memory_space<vmem>>, vector<1x8x256xf32>
    %526 = vector.shape_cast %525 : vector<1x8x256xf32> to vector<8x256xf32>
    %527 = vector.shape_cast %524 : vector<8x256xf32> to vector<1x8x256xf32>
    tpu.vector_store %arg8[%c0_64, %c0_65, %c0_66], %527 {strides = array<i32>} : memref<2x8x256xf32, #tpu.memory_space<vmem>>, vector<1x8x256xf32>,
    %c1_67 = arith.constant 1 : index
    %c0_68 = arith.constant 0 : index
    %c0_69 = arith.constant 0 : index
    %528 = vector.load %arg1[%c1_67, %c0_68, %c0_69] : memref<2x8x256xbf16, #tpu.memory_space<vmem>>, vector<1x8x256xbf16>
    %529 = vector.shape_cast %528 : vector<1x8x256xbf16> to vector<8x256xbf16>
    %cst_70 = arith.constant dense<0.000000e+00> : vector<16x256xf32>
    %530 = tpu.matmul %492, %529, %cst_70 {dimension_numbers = #tpu.dot_dimension_numbers<[1], [0], [0], [1], [0, 0, 1, 1], [], []>} : vector<16x8xbf16>, vector<8x256xbf16>, vector<16x256xf32> -> vector<16x256xf32>
    %531 = vector.extract_strided_slice %0 {offsets = [1, 0, 0], sizes = [1, 8, 256], strides = [1, 1, 1]} : vector<2x8x256xf32> to vector<1x8x256xf32>
    %532 = vector.shape_cast %531 : vector<1x8x256xf32> to vector<8x256xf32>
    %533 = arith.truncf %532 : vector<8x256xf32> to vector<8x256xbf16>
    %cst_71 = arith.constant dense<0.000000e+00> : vector<16x256xf32>
    %534 = tpu.matmul %493, %533, %cst_71 {dimension_numbers = #tpu.dot_dimension_numbers<[1], [0], [0], [1], [0, 0, 1, 1], [], []>} : vector<16x8xbf16>, vector<8x256xbf16>, vector<16x256xf32> -> vector<16x256xf32>
    %535 = arith.addf %530, %534 : vector<16x256xf32>
    %536 = vector.broadcast %490 : vector<16x1xf32> to vector<16x256xf32>
    %537 = arith.addf %535, %536 : vector<16x256xf32>
    %cst_72 = arith.constant 0.000000e+00 : f32
    %538 = vector.broadcast %cst_72 : f32 to vector<16x256xf32>
    %539 = arith.maximumf %537, %538 : vector<16x256xf32>
    %540 = vector.broadcast %491 : vector<16x1xf32> to vector<16x256xf32>
    %541 = arith.mulf %539, %540 : vector<16x256xf32>
    %cst_73 = arith.constant dense<0.000000e+00> : vector<256xf32>
    %542 = vector.multi_reduction <add>, %541, %cst_73 [0] : vector<16x256xf32> to vector<256xf32>
    %543 = vector.shape_cast %542 : vector<256xf32> to vector<1x256xf32>
    %c98_74 = arith.constant 98 : index
    %544 = memref.load %arg7[%c98_74] : memref<100xf32, #tpu.memory_space<smem>>
    %545 = vector.broadcast %544 : f32 to vector<1x256xf32>
    %546 = arith.addf %543, %545 : vector<1x256xf32>
    %cst_75 = arith.constant 0.000000e+00 : f32
    %547 = vector.broadcast %cst_75 : f32 to vector<1x256xf32>
    %548 = arith.subf %547, %546 : vector<1x256xf32>
    %549 = math.exp %548 : vector<1x256xf32>
    %cst_76 = arith.constant 1.000000e+00 : f32
    %550 = vector.broadcast %cst_76 : f32 to vector<1x256xf32>
    %551 = arith.addf %550, %549 : vector<1x256xf32>
    %552 = tpu.reciprocal %551 {approx = true} : vector<1x256xf32> -> vector<1x256xf32>
    %553 = vector.extract_strided_slice %0 {offsets = [1, 0, 0], sizes = [1, 8, 256], strides = [1, 1, 1]} : vector<2x8x256xf32> to vector<1x8x256xf32>
    %554 = vector.shape_cast %553 : vector<1x8x256xf32> to vector<8x256xf32>
    %555 = vector.extract_strided_slice %489 {offsets = [1, 0], sizes = [1, 256], strides = [1, 1]} : vector<2x256xf32> to vector<1x256xf32>
    %556 = arith.mulf %552, %555 : vector<1x256xf32>
    %557 = vector.broadcast %556 : vector<1x256xf32> to vector<8x256xf32>
    %558 = arith.mulf %554, %557 : vector<8x256xf32>
    %c1_77 = arith.constant 1 : index
    %c0_78 = arith.constant 0 : index
    %c0_79 = arith.constant 0 : index
    %559 = vector.load %arg8[%c1_77, %c0_78, %c0_79] : memref<2x8x256xf32, #tpu.memory_space<vmem>>, vector<1x8x256xf32>
    %560 = vector.shape_cast %559 : vector<1x8x256xf32> to vector<8x256xf32>
    %561 = vector.shape_cast %558 : vector<8x256xf32> to vector<1x8x256xf32>
    tpu.vector_store %arg8[%c1_77, %c0_78, %c0_79], %561 {strides = array<i32>} : memref<2x8x256xf32, #tpu.memory_space<vmem>>, vector<1x8x256xf32>,
    return
  }
  func.func @transform_0(%arg0: i32) -> (i32, i32, i32) {
    %c0_i32 = arith.constant 0 : i32
    %c0_i32_0 = arith.constant 0 : i32
    %c0_i32_1 = arith.constant 0 : i32
    return %arg0, %c0_i32, %c0_i32_0 : i32, i32, i32
  }
  func.func @transform_1(%arg0: i32) -> (i32, i32, i32) {
    %c0_i32 = arith.constant 0 : i32
    %c0_i32_0 = arith.constant 0 : i32
    %c0_i32_1 = arith.constant 0 : i32
    return %arg0, %c0_i32, %c0_i32_0 : i32, i32, i32
  }
  func.func @transform_2(%arg0: i32) -> (i32, i32) {
    %c0_i32 = arith.constant 0 : i32
    %c0_i32_0 = arith.constant 0 : i32
    %c0_i32_1 = arith.constant 0 : i32
    return %c0_i32, %c0_i32_0 : i32, i32
  }
  func.func @transform_3(%arg0: i32) -> (i32, i32) {
    %c0_i32 = arith.constant 0 : i32
    %c0_i32_0 = arith.constant 0 : i32
    %c0_i32_1 = arith.constant 0 : i32
    return %c0_i32, %c0_i32_0 : i32, i32
  }
  func.func @transform_4(%arg0: i32) -> (i32, i32) {
    %c0_i32 = arith.constant 0 : i32
    %c0_i32_0 = arith.constant 0 : i32
    %c0_i32_1 = arith.constant 0 : i32
    return %c0_i32, %c0_i32_0 : i32, i32
  }
  func.func @transform_5(%arg0: i32) -> (i32, i32) {
    %c0_i32 = arith.constant 0 : i32
    %c0_i32_0 = arith.constant 0 : i32
    %c0_i32_1 = arith.constant 0 : i32
    return %c0_i32, %c0_i32_0 : i32, i32
  }
  func.func @transform_6(%arg0: i32) -> i32 {
    %c0_i32 = arith.constant 0 : i32
    %c0_i32_0 = arith.constant 0 : i32
    return %c0_i32 : i32
  }
  func.func @transform_7(%arg0: i32) -> (i32, i32, i32) {
    %c0_i32 = arith.constant 0 : i32
    %c0_i32_0 = arith.constant 0 : i32
    %c0_i32_1 = arith.constant 0 : i32
    return %arg0, %c0_i32, %c0_i32_0 : i32, i32, i32
  }
}

</mosaic_0001>

<llo_original>
// kernel: tpu_custom_call.1
$region0: #{tpu_custom_call.1}
  #allocation0 [shape = 'u32[]', space=smem, size = 0x4, offset = 0x4, fixed_abs, tag = 'smem constant byte address 0x4 - core index']
  #allocation1 [shape = 'u32[144,128]{1,0:T(1,128)}', space=vmem, size = 0x12000, scoped, tag = 'internal scratch']
  %s0 = inlined_call_operand.vmem [shape: bf16[4,8,256], index: 0, kind: input, shape index: {}]
  %s1 = inlined_call_operand.hbm [shape: f32[4,8,256], index: 1, kind: input, shape index: {}]
  %s2 = inlined_call_operand.vmem [shape: bf16[16,8], index: 2, kind: input, shape index: {}]
  %s3 = inlined_call_operand.vmem [shape: bf16[16,8], index: 3, kind: input, shape index: {}]
  %s4 = inlined_call_operand.vmem [shape: f32[16,2], index: 4, kind: input, shape index: {}]
  %s5 = inlined_call_operand.hbm [shape: f32[14,256], index: 5, kind: input, shape index: {}]
  %s6 = inlined_call_operand.vmem [shape: f32[100], index: 6, kind: input, shape index: {}]
  %s7 = inlined_call_operand.hbm [shape: f32[4,8,256], index: 7, kind: output, shape index: {}]
  %s8 = sld [smem:[#allocation0]]
  $region73: #{tpu_custom_call.1} parent=0
    _
  %s10 = ssub.s32 1, %s8
  %s11 = scalar_select 0, %s10, %s8
  $region1: #{tpu_custom_call.1} parent=0
    #allocation2 [shape = 'u8[32768]{0}', space=vmem, size = 0x8000, scoped, tag = 'input window, operand 1']
    #allocation3 [shape = 's32[2]{0}', space=sflag, size = 0x8, scoped, tag = 'scoped memory for tpu_custom_call.1']
    #allocation4 [shape = 's32[2]{0}', space=sflag, size = 0x8, scoped, tag = 'scoped memory for tpu_custom_call.1']
    #allocation5 [shape = 's32[2]{0}', space=sflag, size = 0x8, scoped, tag = 'scoped memory for tpu_custom_call.1']
    #allocation6 [shape = 'u8[16384]{0}', space=vmem, size = 0x4000, scoped, tag = 'input window, operand 5, single buffered']
    #allocation7 [shape = 's32[1]{0}', space=sflag, size = 0x4, scoped, tag = 'scoped memory for tpu_custom_call.1']
    #allocation8 [shape = 'u8[512]{0}', space=smem, size = 0x200, scoped, tag = 'input window, operand 6, single buffered']
    #allocation9 [shape = 'u8[32768]{0}', space=vmem, size = 0x8000, scoped, tag = 'output window, operand 0']
    %12 = vsyncpa [#allocation3], 0
    %s13 = scalar_lea.sflag [#allocation3], 1
    %14 = vsyncpa %s13, 0
    %15 = vsyncpa [#allocation7], 0
    %16 = vsyncpa [#allocation5], 0
    %17 = vsyncpa [#allocation4], 0
    %s18 = scalar_lea.sflag [#allocation4], 1
    %19 = vsyncpa %s18, 0
    loop: start=0, step=1, limit=4
    $region2: #{tpu_custom_call.1} parent=1 // loop_pre_header
      _
    $region3: #{tpu_custom_call.1} parent=1 // loop_header
      %s21 = sphi 0, %s25
      %p22 = scmp.ge.s32.totalorder %s21, 4
      %s31 = sphi 0, %s33
      %s34 = sphi 0, %s31
      %s35 = sphi 0, %s34
      %s51 = sphi 0, %s35
      %s57 = sphi 0, %s59
      %s60 = sphi 0, %s57
      %s61 = sphi 0, %s60
      %s77 = sphi 0, %s61
      %s81 = sphi 0, %s81
      %s83 = sphi 0, %s81
      %s84 = sphi 0, %s83
      %s98 = sphi 0, %s84
      %s102 = sphi 0, %s102
      %s104 = sphi 0, %s102
      %s105 = sphi 0, %s104
      %s119 = sphi 0, %s105
      %s123 = sphi 0, %s123
      %s125 = sphi 0, %s123
      %s126 = sphi 0, %s125
      %s140 = sphi 0, %s126
      %s144 = sphi 0, %s144
      %s146 = sphi 0, %s144
      %s147 = sphi 0, %s146
      %s161 = sphi 0, %s147
      %s165 = sphi 0, %s165
      %s167 = sphi 0, %s165
      %s168 = sphi 0, %s167
      %s182 = sphi 0, %s168
      %s188 = sphi 0, %s190
      %s191 = sphi 0, %s188
      %s192 = sphi 0, %s191
      %s208 = sphi 0, %s192
    $region4: #{tpu_custom_call.1} parent=1 // loop_header_branch
      %24 = sbr.rel (%p22) target = $region8
    $region5: #{tpu_custom_call.1} parent=1 // loop_body
      %s26 = ssub.s32 %s21, 1
      %s27 = ssub.s32 %s21, 2
      %s28 = sadd.s32 %s21, 1
      %s29 = ssub.s32 %s21, %s28
      %p30 = scmp.eq.s32.totalorder %s29, 0
      %s32 = sadd.s32 %s31, 1
      %s33 = scalar_select %p30, %s31, %s32
      %p36 = pneg %p30
      %p37 = scmp.eq.s32.totalorder %s21, 1
      %p38 = por %p36, %p37
      %p39 = scmp.ne.s32.totalorder %s31, %s34
      %p40 = scmp.eq.s32.totalorder %s21, 0
      %p41 = por %p39, %p40
      %p42 = scmp.ne.s32.totalorder %s31, %s34
      %p43 = scmp.eq.s32.totalorder %s26, 1
      %p44 = por %p42, %p43
      %p45 = scmp.ne.s32.totalorder %s34, %s35
      %p46 = scmp.eq.s32.totalorder %s26, 0
      %p47 = por %p45, %p46
      %p48 = scmp.ne.s32.totalorder %s34, %s35
      %p49 = scmp.eq.s32.totalorder %s27, 1
      %p50 = por %p48, %p49
      %p52 = scmp.ne.s32.totalorder %s35, %s51
      %p53 = scmp.eq.s32.totalorder %s27, 0
      %p54 = por %p52, %p53
      %s55 = ssub.s32 %s21, %s28
      %p56 = scmp.eq.s32.totalorder %s55, 0
      %s58 = sadd.s32 %s57, 1
      %s59 = scalar_select %p56, %s57, %s58
      %p62 = pneg %p56
      %p63 = scmp.eq.s32.totalorder %s21, 1
      %p64 = por %p62, %p63
      %p65 = scmp.ne.s32.totalorder %s57, %s60
      %p66 = scmp.eq.s32.totalorder %s21, 0
      %p67 = por %p65, %p66
      %p68 = scmp.ne.s32.totalorder %s57, %s60
      %p69 = scmp.eq.s32.totalorder %s26, 1
      %p70 = por %p68, %p69
      %p71 = scmp.ne.s32.totalorder %s60, %s61
      %p72 = scmp.eq.s32.totalorder %s26, 0
      %p73 = por %p71, %p72
      %p74 = scmp.ne.s32.totalorder %s60, %s61
      %p75 = scmp.eq.s32.totalorder %s27, 1
      %p76 = por %p74, %p75
      %p78 = scmp.ne.s32.totalorder %s61, %s77
      %p79 = scmp.eq.s32.totalorder %s27, 0
      %p80 = por %p78, %p79
      %s82 = sadd.s32 %s81, 1
      %p85 = scmp.eq.s32.totalorder %s21, 1
      %p86 = scmp.ne.s32.totalorder %s81, %s83
      %p87 = scmp.eq.s32.totalorder %s21, 0
      %p88 = por %p86, %p87
      %p89 = scmp.ne.s32.totalorder %s81, %s83
      %p90 = scmp.eq.s32.totalorder %s26, 1
      %p91 = por %p89, %p90
      %p92 = scmp.ne.s32.totalorder %s83, %s84
      %p93 = scmp.eq.s32.totalorder %s26, 0
      %p94 = por %p92, %p93
      %p95 = scmp.ne.s32.totalorder %s83, %s84
      %p96 = scmp.eq.s32.totalorder %s27, 1
      %p97 = por %p95, %p96
      %p99 = scmp.ne.s32.totalorder %s84, %s98
      %p100 = scmp.eq.s32.totalorder %s27, 0
      %p101 = por %p99, %p100
      %s103 = sadd.s32 %s102, 1
      %p106 = scmp.eq.s32.totalorder %s21, 1
      %p107 = scmp.ne.s32.totalorder %s102, %s104
      %p108 = scmp.eq.s32.totalorder %s21, 0
      %p109 = por %p107, %p108
      %p110 = scmp.ne.s32.totalorder %s102, %s104
      %p111 = scmp.eq.s32.totalorder %s26, 1
      %p112 = por %p110, %p111
      %p113 = scmp.ne.s32.totalorder %s104, %s105
      %p114 = scmp.eq.s32.totalorder %s26, 0
      %p115 = por %p113, %p114
      %p116 = scmp.ne.s32.totalorder %s104, %s105
      %p117 = scmp.eq.s32.totalorder %s27, 1
      %p118 = por %p116, %p117
      %p120 = scmp.ne.s32.totalorder %s105, %s119
      %p121 = scmp.eq.s32.totalorder %s27, 0
      %p122 = por %p120, %p121
      %s124 = sadd.s32 %s123, 1
      %p127 = scmp.eq.s32.totalorder %s21, 1
      %p128 = scmp.ne.s32.totalorder %s123, %s125
      %p129 = scmp.eq.s32.totalorder %s21, 0
      %p130 = por %p128, %p129
      %p131 = scmp.ne.s32.totalorder %s123, %s125
      %p132 = scmp.eq.s32.totalorder %s26, 1
      %p133 = por %p131, %p132
      %p134 = scmp.ne.s32.totalorder %s125, %s126
      %p135 = scmp.eq.s32.totalorder %s26, 0
      %p136 = por %p134, %p135
      %p137 = scmp.ne.s32.totalorder %s125, %s126
      %p138 = scmp.eq.s32.totalorder %s27, 1
      %p139 = por %p137, %p138
      %p141 = scmp.ne.s32.totalorder %s126, %s140
      %p142 = scmp.eq.s32.totalorder %s27, 0
      %p143 = por %p141, %p142
      %s145 = sadd.s32 %s144, 1
      %p148 = scmp.eq.s32.totalorder %s21, 1
      %p149 = scmp.ne.s32.totalorder %s144, %s146
      %p150 = scmp.eq.s32.totalorder %s21, 0
      %p151 = por %p149, %p150
      %p152 = scmp.ne.s32.totalorder %s144, %s146
      %p153 = scmp.eq.s32.totalorder %s26, 1
      %p154 = por %p152, %p153
      %p155 = scmp.ne.s32.totalorder %s146, %s147
      %p156 = scmp.eq.s32.totalorder %s26, 0
      %p157 = por %p155, %p156
      %p158 = scmp.ne.s32.totalorder %s146, %s147
      %p159 = scmp.eq.s32.totalorder %s27, 1
      %p160 = por %p158, %p159
      %p162 = scmp.ne.s32.totalorder %s147, %s161
      %p163 = scmp.eq.s32.totalorder %s27, 0
      %p164 = por %p162, %p163
      %s166 = sadd.s32 %s165, 1
      %p169 = scmp.eq.s32.totalorder %s21, 1
      %p170 = scmp.ne.s32.totalorder %s165, %s167
      %p171 = scmp.eq.s32.totalorder %s21, 0
      %p172 = por %p170, %p171
      %p173 = scmp.ne.s32.totalorder %s165, %s167
      %p174 = scmp.eq.s32.totalorder %s26, 1
      %p175 = por %p173, %p174
      %p176 = scmp.ne.s32.totalorder %s167, %s168
      %p177 = scmp.eq.s32.totalorder %s26, 0
      %p178 = por %p176, %p177
      %p179 = scmp.ne.s32.totalorder %s167, %s168
      %p180 = scmp.eq.s32.totalorder %s27, 1
      %p181 = por %p179, %p180
      %p183 = scmp.ne.s32.totalorder %s168, %s182
      %p184 = scmp.eq.s32.totalorder %s27, 0
      %p185 = por %p183, %p184
      %s186 = ssub.s32 %s21, %s28
      %p187 = scmp.eq.s32.totalorder %s186, 0
      %s189 = sadd.s32 %s188, 1
      %s190 = scalar_select %p187, %s188, %s189
      %p193 = pneg %p187
      %p194 = scmp.eq.s32.totalorder %s21, 1
      %p195 = por %p193, %p194
      %p196 = scmp.ne.s32.totalorder %s188, %s191
      %p197 = scmp.eq.s32.totalorder %s21, 0
      %p198 = por %p196, %p197
      %p199 = scmp.ne.s32.totalorder %s188, %s191
      %p200 = scmp.eq.s32.totalorder %s26, 1
      %p201 = por %p199, %p200
      %p202 = scmp.ne.s32.totalorder %s191, %s192
      %p203 = scmp.eq.s32.totalorder %s26, 0
      %p204 = por %p202, %p203
      %p205 = scmp.ne.s32.totalorder %s191, %s192
      %p206 = scmp.eq.s32.totalorder %s27, 1
      %p207 = por %p205, %p206
      %p209 = scmp.ne.s32.totalorder %s192, %s208
      %p210 = scmp.eq.s32.totalorder %s27, 0
      %p211 = por %p209, %p210
      %p212 = scmp.le.s32.totalorder 1, %s21
      %p213 = scmp.lt.s32.totalorder %s21, 3
      %p214 = pnand %p212, %p213
      %p215 = pneg %p214
      // Predicated region
      $region9: #{tpu_custom_call.1} parent=5 // pred_check
        _
      $region10: #{tpu_custom_call.1} parent=5 // pred_check_branch
        %217 = sbr.rel (%p214) target = $region12
      $region11: #{tpu_custom_call.1} parent=5 // pred_region
        %s218 = ssub.s32 %s21, 1
        // Predicated region
        $region13: #{tpu_custom_call.1} parent=11 // pred_check
          %p219 = pneg %p94
        $region14: #{tpu_custom_call.1} parent=11 // pred_check_branch
          %221 = sbr.rel (%p219) target = $region16
        $region15: #{tpu_custom_call.1} parent=11 // pred_region
          _
        $region16: #{tpu_custom_call.1} parent=11 // pred_fallthru
          _
        // Predicated region
        $region17: #{tpu_custom_call.1} parent=11 // pred_check
          %p222 = pneg %p115
        $region18: #{tpu_custom_call.1} parent=11 // pred_check_branch
          %224 = sbr.rel (%p222) target = $region20
        $region19: #{tpu_custom_call.1} parent=11 // pred_region
          _
        $region20: #{tpu_custom_call.1} parent=11 // pred_fallthru
          _
        // Predicated region
        $region21: #{tpu_custom_call.1} parent=11 // pred_check
          %p225 = pneg %p136
        $region22: #{tpu_custom_call.1} parent=11 // pred_check_branch
          %227 = sbr.rel (%p225) target = $region24
        $region23: #{tpu_custom_call.1} parent=11 // pred_region
          _
        $region24: #{tpu_custom_call.1} parent=11 // pred_fallthru
          _
        // Predicated region
        $region25: #{tpu_custom_call.1} parent=11 // pred_check
          %p228 = pneg %p157
        $region26: #{tpu_custom_call.1} parent=11 // pred_check_branch
          %230 = sbr.rel (%p228) target = $region28
        $region27: #{tpu_custom_call.1} parent=11 // pred_region
          %s232 = ssub.s32 512, 512
          %233 = vsyncadd [#allocation7], %s232
          %s234 = sshll.u32 [#allocation6], 4
          %s235 = int_to_ptr.vmem [resolvable:$true] %s234
          %240 = dma.hbm_to_vmem [thread:$0]  %s5, 512, %s235, [#allocation7], 256, 256, 16
        $region28: #{tpu_custom_call.1} parent=11 // pred_fallthru
          _
        // Predicated region
        $region29: #{tpu_custom_call.1} parent=11 // pred_check
          %p241 = pneg %p178
        $region30: #{tpu_custom_call.1} parent=11 // pred_check_branch
          %243 = sbr.rel (%p241) target = $region32
        $region31: #{tpu_custom_call.1} parent=11 // pred_region
          %s245 = ssub.s32 16, 16
          %246 = vsyncadd [#allocation5], %s245
          %s248 = sshll.u32 %s6, 4
          %s249 = int_to_ptr.vmem [resolvable:$true] %s248
          %251 = dma.vmem_to_smem %s249, 16, [#allocation8], [#allocation5]
        $region32: #{tpu_custom_call.1} parent=11 // pred_fallthru
          _
      $region12: #{tpu_custom_call.1} parent=5 // pred_fallthru
        _
      %p252 = scmp.lt.s32.totalorder %s21, 2
      // Predicated region
      $region33: #{tpu_custom_call.1} parent=5 // pred_check
        %p253 = pneg %p252
      $region34: #{tpu_custom_call.1} parent=5 // pred_check_branch
        %255 = sbr.rel (%p253) target = $region36
      $region35: #{tpu_custom_call.1} parent=5 // pred_region
        // Predicated region
        $region37: #{tpu_custom_call.1} parent=35 // pred_check
          %p256 = pneg %p41
        $region38: #{tpu_custom_call.1} parent=35 // pred_check_branch
          %258 = sbr.rel (%p256) target = $region40
        $region39: #{tpu_custom_call.1} parent=35 // pred_region
          %s259 = smul.u32 2, %s21
          %p260 = scmp.lt.s32.totalorder %s259, 3
          %s261 = scalar_select %p260, %s259, 3
          %s262 = smul.addr %s261, 2
          %s263 = smul.addr %s262, 4
          %s264 = scalar_lea.vmem %s0, %s263
          %s265 = smul.u32 2, %s21
        $region40: #{tpu_custom_call.1} parent=35 // pred_fallthru
          _
        // Predicated region
        $region41: #{tpu_custom_call.1} parent=35 // pred_check
          %p266 = pneg %p67
        $region42: #{tpu_custom_call.1} parent=35 // pred_check_branch
          %268 = sbr.rel (%p266) target = $region44
        $region43: #{tpu_custom_call.1} parent=35 // pred_region
          %s269 = sand.u32 %s57, 1
          %s270 = scalar_lea.sflag [#allocation3], %s269
          %s271 = sand.u32 %s57, 1
          %s272 = smul.addr %s271, 32
          %s273 = scalar_lea.vmem [#allocation2], %s272
          %s274 = smul.u32 2, %s21
          %s276 = ssub.s32 512, 512
          %277 = vsyncadd %s270, %s276
          %s278 = smul.addr %s274, 2
          %s279 = smul.addr %s278, 128
          %s280 = scalar_lea.hbm %s1, %s279
          %s281 = sshll.u32 %s273, 4
          %s282 = int_to_ptr.vmem [resolvable:$true] %s281
          %287 = dma.hbm_to_vmem [thread:$0]  %s280, 512, %s282, %s270, 256, 256, 16
        $region44: #{tpu_custom_call.1} parent=35 // pred_fallthru
          _
      $region36: #{tpu_custom_call.1} parent=5 // pred_fallthru
        _
      %p288 = scmp.le.s32.totalorder 1, %s21
      %p289 = scmp.lt.s32.totalorder %s21, 3
      %p290 = pnand %p288, %p289
      %p291 = pneg %p290
      // Predicated region
      $region45: #{tpu_custom_call.1} parent=5 // pred_check
        _
      $region46: #{tpu_custom_call.1} parent=5 // pred_check_branch
        %293 = sbr.rel (%p290) target = $region48
      $region47: #{tpu_custom_call.1} parent=5 // pred_region
        %s294 = ssub.s32 %s21, 1
        %s295 = sand.u32 %s60, 1
        %s296 = scalar_lea.sflag [#allocation3], %s295
        %s297 = sand.u32 %s60, 1
        %s298 = smul.addr %s297, 32
        %s299 = scalar_lea.vmem [#allocation2], %s298
        // Predicated region
        $region49: #{tpu_custom_call.1} parent=47 // pred_check
          %p300 = pneg %p73
        $region50: #{tpu_custom_call.1} parent=47 // pred_check_branch
          %302 = sbr.rel (%p300) target = $region52
        $region51: #{tpu_custom_call.1} parent=47 // pred_region
          %303 = dma.done %s296, 512
        $region52: #{tpu_custom_call.1} parent=47 // pred_fallthru
          _
        // Predicated region
        $region53: #{tpu_custom_call.1} parent=47 // pred_check
          %p304 = pneg %p157
        $region54: #{tpu_custom_call.1} parent=47 // pred_check_branch
          %306 = sbr.rel (%p304) target = $region56
        $region55: #{tpu_custom_call.1} parent=47 // pred_region
          %307 = dma.done [#allocation7], 512
        $region56: #{tpu_custom_call.1} parent=47 // pred_fallthru
          _
        // Predicated region
        $region57: #{tpu_custom_call.1} parent=47 // pred_check
          %p308 = pneg %p178
        $region58: #{tpu_custom_call.1} parent=47 // pred_check_branch
          %310 = sbr.rel (%p308) target = $region60
        $region59: #{tpu_custom_call.1} parent=47 // pred_region
          %311 = dma.done [#allocation5], 16
        $region60: #{tpu_custom_call.1} parent=47 // pred_fallthru
          _
        %312 = sfence
        %s313 = smul.u32 2, %s26
        %p314 = scmp.lt.s32.totalorder %s313, 3
        %s315 = scalar_select %p314, %s313, 3
        %s316 = smul.addr %s315, 2
        %s317 = smul.addr %s316, 4
        %s318 = scalar_lea.vmem %s0, %s317
        %p319 = pneg %p47
        %p320 = pneg %p44
        %s321 = sand.u32 %s60, 1
        %s322 = scalar_lea.sflag [#allocation3], %s321
        %s323 = sand.u32 %s60, 1
        %s324 = smul.addr %s323, 32
        %s325 = scalar_lea.vmem [#allocation2], %s324
        %p326 = pneg %p73
        %p327 = pneg %p70
        %p328 = pneg %p94
        %p329 = pneg %p91
        %p330 = pneg %p115
        %p331 = pneg %p112
        %p332 = pneg %p136
        %p333 = pneg %p133
        %p334 = pneg %p157
        %p335 = pneg %p154
        %p336 = pneg %p178
        %p337 = pneg %p175
        %p338 = pneg %p204
        %p339 = pneg %p201
        %s340 = sand.u32 %s191, 1
        %s341 = scalar_lea.sflag [#allocation4], %s340
        %s342 = sand.u32 %s191, 1
        %s343 = smul.addr %s342, 32
        %s344 = scalar_lea.vmem [#allocation9], %s343
        %s345 = smul.u32 2, %s26
        %p346 = scmp.lt.s32.totalorder %s345, 3
        %s347 = scalar_select %p346, %s345, 3
        %s348 = smul.addr %s347, 2
        %s349 = smul.addr %s348, 4
        %s350 = scalar_lea.vmem %s0, %s349
        %s351 = smul.u32 2, %s26
        %s352 = smul.u32 2, %s26
        %s353 = smul.u32 2, %s26
        %v355 = vld [vmem:[%s299] sm:$0xff]
        %v356 = vld [vmem:[%s299 + $0x8] sm:$0xff]
        %v357 = vld [vmem:[%s299 + $0x10] sm:$0xff]
        %v358 = vld [vmem:[%s299 + $0x18] sm:$0xff]
        %v359 = vrot.slane %v355, 4
        %v360 = vadd.f32 %v355, %v359
        %v361 = vrot.slane %v360, 2
        %v362 = vadd.f32 %v360, %v361
        %v363 = vrot.slane %v362, 1
        %v364 = vadd.f32 %v362, %v363
        %v365 = vrot.slane %v356, 4
        %v366 = vadd.f32 %v356, %v365
        %v367 = vrot.slane %v366, 2
        %v368 = vadd.f32 %v366, %v367
        %v369 = vrot.slane %v368, 1
        %v370 = vadd.f32 %v368, %v369
        %v371 = vrot.slane %v357, 4
        %v372 = vadd.f32 %v357, %v371
        %v373 = vrot.slane %v372, 2
        %v374 = vadd.f32 %v372, %v373
        %v375 = vrot.slane %v374, 1
        %v376 = vadd.f32 %v374, %v375
        %v377 = vrot.slane %v358, 4
        %v378 = vadd.f32 %v358, %v377
        %v379 = vrot.slane %v378, 2
        %v380 = vadd.f32 %v378, %v379
        %v381 = vrot.slane %v380, 1
        %v382 = vadd.f32 %v380, %v381
        %v383 = vrcp.pop 8.0
        %v384 = vmul.f32 %v364, %v383
        %v385 = vmul.f32 %v370, %v383
        %v386 = vmul.f32 %v376, %v383
        %v387 = vmul.f32 %v382, %v383
        %v388 = vrot.slane %v355, 4
        %v389 = vmax.f32 %v355, %v388
        %v390 = vrot.slane %v389, 2
        %v391 = vmax.f32 %v389, %v390
        %v392 = vrot.slane %v391, 1
        %v393 = vmax.f32 %v391, %v392
        %v394 = vrot.slane %v356, 4
        %v395 = vmax.f32 %v356, %v394
        %v396 = vrot.slane %v395, 2
        %v397 = vmax.f32 %v395, %v396
        %v398 = vrot.slane %v397, 1
        %v399 = vmax.f32 %v397, %v398
        %v400 = vrot.slane %v357, 4
        %v401 = vmax.f32 %v357, %v400
        %v402 = vrot.slane %v401, 2
        %v403 = vmax.f32 %v401, %v402
        %v404 = vrot.slane %v403, 1
        %v405 = vmax.f32 %v403, %v404
        %v406 = vrot.slane %v358, 4
        %v407 = vmax.f32 %v358, %v406
        %v408 = vrot.slane %v407, 2
        %v409 = vmax.f32 %v407, %v408
        %v410 = vrot.slane %v409, 1
        %v411 = vmax.f32 %v409, %v410
        %v412 = vld [vmem:[#allocation6] ss:$8 sm:$0x3]
        %vm417 = vcmask 1041409
        %v418 = vsel %vm417, %v386, %v384
        %v419 = vsel %vm417, %v387, %v385
        %422 = vrot.lane.b32.xlu0 %v418, 48
        %v423 = vpop.permute.xlu0 %422
        %424 = vrot.lane.b32.xlu0 %v419, 48
        %v425 = vpop.permute.xlu0 %424
        %v426 = vlaneseq
        %v427 = vand.u32 %v426, 127
        %vm428 = vcmp.lt.s32.totalorder %v427, 48
        %v429 = vsel %vm428, %v423, %v425
        %v430 = vsel %vm428, %v425, %v423
        %v432 = vlaneseq
        %v433 = vshrl.u32 %v432, 7
        %v434 = vsub.s32 0, %v433
        %v435 = vrot.slane %v412, %v434
        %v436 = vlaneseq
        %v437 = vshrl.u32 %v436, 7
        %v438 = vsub.s32 1, %v437
        %v439 = vrot.slane %v412, %v438
        %v442 = vmul.f32 %v435, %v430
        %v443 = vmul.f32 %v439, %v429
        %v448 = vsel %vm417, %v405, %v393
        %v449 = vsel %vm417, %v411, %v399
        %452 = vrot.lane.b32.xlu0 %v448, 48
        %v453 = vpop.permute.xlu0 %452
        %454 = vrot.lane.b32.xlu0 %v449, 48
        %v455 = vpop.permute.xlu0 %454
        %v456 = vsel %vm428, %v453, %v455
        %v457 = vsel %vm428, %v455, %v453
        %v458 = vmul.f32 %v435, %v457
        %v459 = vmul.f32 %v439, %v456
        %s460 = scalar_lea.vmem [#allocation6], 1
        %v461 = vld [vmem:[%s460] ss:$8 sm:$0x3]
        %462 = vrot.lane.b32.xlu0 %v418, 32
        %v463 = vpop.permute.xlu0 %462
        %464 = vrot.lane.b32.xlu0 %v419, 32
        %v465 = vpop.permute.xlu0 %464
        %vm466 = vcmp.lt.s32.totalorder %v427, 32
        %v467 = vsel %vm466, %v463, %v465
        %v468 = vsel %vm466, %v465, %v463
        %v470 = vlaneseq
        %v471 = vshrl.u32 %v470, 7
        %v472 = vsub.s32 0, %v471
        %v473 = vrot.slane %v461, %v472
        %v474 = vlaneseq
        %v475 = vshrl.u32 %v474, 7
        %v476 = vsub.s32 1, %v475
        %v477 = vrot.slane %v461, %v476
        %v480 = vmul.f32 %v473, %v468
        %v481 = vmul.f32 %v477, %v467
        %482 = vrot.lane.b32.xlu0 %v448, 32
        %v483 = vpop.permute.xlu0 %482
        %484 = vrot.lane.b32.xlu0 %v449, 32
        %v485 = vpop.permute.xlu0 %484
        %v486 = vsel %vm466, %v483, %v485
        %v487 = vsel %vm466, %v485, %v483
        %v488 = vmul.f32 %v473, %v487
        %v489 = vmul.f32 %v477, %v486
        %s490 = scalar_lea.vmem [#allocation6], 2
        %v491 = vld [vmem:[%s490] ss:$8 sm:$0x3]
        %492 = vrot.lane.b32.xlu0 %v418, 16
        %v493 = vpop.permute.xlu0 %492
        %494 = vrot.lane.b32.xlu0 %v419, 16
        %v495 = vpop.permute.xlu0 %494
        %vm496 = vcmp.lt.s32.totalorder %v427, 16
        %v497 = vsel %vm496, %v493, %v495
        %v498 = vsel %vm496, %v495, %v493
        %v500 = vlaneseq
        %v501 = vshrl.u32 %v500, 7
        %v502 = vsub.s32 0, %v501
        %v503 = vrot.slane %v491, %v502
        %v504 = vlaneseq
        %v505 = vshrl.u32 %v504, 7
        %v506 = vsub.s32 1, %v505
        %v507 = vrot.slane %v491, %v506
        %v510 = vmul.f32 %v503, %v498
        %v511 = vmul.f32 %v507, %v497
        %512 = vrot.lane.b32.xlu0 %v448, 16
        %v513 = vpop.permute.xlu0 %512
        %514 = vrot.lane.b32.xlu0 %v449, 16
        %v515 = vpop.permute.xlu0 %514
        %v516 = vsel %vm496, %v513, %v515
        %v517 = vsel %vm496, %v515, %v513
        %v518 = vmul.f32 %v503, %v517
        %v519 = vmul.f32 %v507, %v516
        %s520 = scalar_lea.vmem [#allocation6], 4
        %v521 = vld [vmem:[%s520] ss:$8 sm:$0x3]
        %522 = vrot.lane.b32.xlu0 %v418, 112
        %v523 = vpop.permute.xlu0 %522
        %524 = vrot.lane.b32.xlu0 %v419, 112
        %v525 = vpop.permute.xlu0 %524
        %vm526 = vcmp.lt.s32.totalorder %v427, 112
        %v527 = vsel %vm526, %v523, %v525
        %v528 = vsel %vm526, %v525, %v523
        %v530 = vlaneseq
        %v531 = vshrl.u32 %v530, 7
        %v532 = vsub.s32 0, %v531
        %v533 = vrot.slane %v521, %v532
        %v534 = vlaneseq
        %v535 = vshrl.u32 %v534, 7
        %v536 = vsub.s32 1, %v535
        %v537 = vrot.slane %v521, %v536
        %v540 = vmul.f32 %v533, %v527
        %v541 = vmul.f32 %v537, %v528
        %542 = vrot.lane.b32.xlu0 %v448, 112
        %v543 = vpop.permute.xlu0 %542
        %544 = vrot.lane.b32.xlu0 %v449, 112
        %v545 = vpop.permute.xlu0 %544
        %v546 = vsel %vm526, %v543, %v545
        %v547 = vsel %vm526, %v545, %v543
        %v548 = vmul.f32 %v533, %v546
        %v549 = vmul.f32 %v537, %v547
        %s550 = scalar_lea.vmem [#allocation6], 5
        %v551 = vld [vmem:[%s550] ss:$8 sm:$0x3]
        %552 = vrot.lane.b32.xlu0 %v418, 96
        %v553 = vpop.permute.xlu0 %552
        %554 = vrot.lane.b32.xlu0 %v419, 96
        %v555 = vpop.permute.xlu0 %554
        %vm556 = vcmp.lt.s32.totalorder %v427, 96
        %v557 = vsel %vm556, %v553, %v555
        %v558 = vsel %vm556, %v555, %v553
        %v560 = vlaneseq
        %v561 = vshrl.u32 %v560, 7
        %v562 = vsub.s32 0, %v561
        %v563 = vrot.slane %v551, %v562
        %v564 = vlaneseq
        %v565 = vshrl.u32 %v564, 7
        %v566 = vsub.s32 1, %v565
        %v567 = vrot.slane %v551, %v566
        %v570 = vmul.f32 %v563, %v557
        %v571 = vmul.f32 %v567, %v558
        %572 = vrot.lane.b32.xlu0 %v448, 96
        %v573 = vpop.permute.xlu0 %572
        %574 = vrot.lane.b32.xlu0 %v449, 96
        %v575 = vpop.permute.xlu0 %574
        %v576 = vsel %vm556, %v573, %v575
        %v577 = vsel %vm556, %v575, %v573
        %v578 = vmul.f32 %v563, %v576
        %v579 = vmul.f32 %v567, %v577
        %s580 = scalar_lea.vmem [#allocation6], 6
        %v581 = vld [vmem:[%s580] ss:$8 sm:$0x3]
        %582 = vrot.lane.b32.xlu0 %v418, 80
        %v583 = vpop.permute.xlu0 %582
        %584 = vrot.lane.b32.xlu0 %v419, 80
        %v585 = vpop.permute.xlu0 %584
        %vm586 = vcmp.lt.s32.totalorder %v427, 80
        %v587 = vsel %vm586, %v583, %v585
        %v588 = vsel %vm586, %v585, %v583
        %v590 = vlaneseq
        %v591 = vshrl.u32 %v590, 7
        %v592 = vsub.s32 0, %v591
        %v593 = vrot.slane %v581, %v592
        %v594 = vlaneseq
        %v595 = vshrl.u32 %v594, 7
        %v596 = vsub.s32 1, %v595
        %v597 = vrot.slane %v581, %v596
        %v600 = vmul.f32 %v593, %v587
        %v601 = vmul.f32 %v597, %v588
        %602 = vrot.lane.b32.xlu0 %v448, 80
        %v603 = vpop.permute.xlu0 %602
        %604 = vrot.lane.b32.xlu0 %v449, 80
        %v605 = vpop.permute.xlu0 %604
        %v606 = vsel %vm586, %v603, %v605
        %v607 = vsel %vm586, %v605, %v603
        %v608 = vmul.f32 %v593, %v606
        %v609 = vmul.f32 %v597, %v607
        %s610 = sld [smem:[#allocation8]]
        %s611 = sld [smem:[#allocation8 + $0x31]]
        %v612 = vstv %s610
        %v613 = vmul.f32 %v612, %v442
        %v614 = vmul.f32 %v612, %v443
        %v615 = vadd.f32 %v613, 0.0
        %v616 = vadd.f32 %v614, 0.0
        %v617 = vstv %s611
        %v618 = vmul.f32 %v617, %v458
        %v619 = vmul.f32 %v617, %v459
        %v620 = vadd.f32 %v615, %v618
        %v621 = vadd.f32 %v616, %v619
        %s622 = sld [smem:[#allocation8 + $0x7]]
        %s623 = sld [smem:[#allocation8 + $0x38]]
        %v624 = vstv %s622
        %v625 = vmul.f32 %v624, %v480
        %v626 = vmul.f32 %v624, %v481
        %v627 = vadd.f32 %v620, %v625
        %v628 = vadd.f32 %v621, %v626
        %v629 = vstv %s623
        %v630 = vmul.f32 %v629, %v488
        %v631 = vmul.f32 %v629, %v489
        %v632 = vadd.f32 %v627, %v630
        %v633 = vadd.f32 %v628, %v631
        %s634 = sld [smem:[#allocation8 + $0xe]]
        %s635 = sld [smem:[#allocation8 + $0x3f]]
        %v636 = vstv %s634
        %v637 = vmul.f32 %v636, %v510
        %v638 = vmul.f32 %v636, %v511
        %v639 = vadd.f32 %v632, %v637
        %v640 = vadd.f32 %v633, %v638
        %v641 = vstv %s635
        %v642 = vmul.f32 %v641, %v518
        %v643 = vmul.f32 %v641, %v519
        %v644 = vadd.f32 %v639, %v642
        %v645 = vadd.f32 %v640, %v643
        %s646 = sld [smem:[#allocation8 + $0x15]]
        %s647 = sld [smem:[#allocation8 + $0x46]]
        %v648 = vstv %s646
        %v649 = vmul.f32 %v648, %v384
        %v650 = vmul.f32 %v648, %v385
        %v651 = vmul.f32 %v648, %v386
        %v652 = vmul.f32 %v648, %v387
        %v657 = vsel %vm417, %v651, %v649
        %v658 = vsel %vm417, %v652, %v650
        %v661 = vadd.f32 %v644, %v657
        %v662 = vadd.f32 %v645, %v658
        %v663 = vstv %s647
        %v664 = vmul.f32 %v663, %v393
        %v665 = vmul.f32 %v663, %v399
        %v666 = vmul.f32 %v663, %v405
        %v667 = vmul.f32 %v663, %v411
        %v672 = vsel %vm417, %v666, %v664
        %v673 = vsel %vm417, %v667, %v665
        %v676 = vadd.f32 %v661, %v672
        %v677 = vadd.f32 %v662, %v673
        %s678 = sld [smem:[#allocation8 + $0x1c]]
        %s679 = sld [smem:[#allocation8 + $0x4d]]
        %v680 = vstv %s678
        %v681 = vmul.f32 %v680, %v540
        %v682 = vmul.f32 %v680, %v541
        %v683 = vadd.f32 %v676, %v681
        %v684 = vadd.f32 %v677, %v682
        %v685 = vstv %s679
        %v686 = vmul.f32 %v685, %v548
        %v687 = vmul.f32 %v685, %v549
        %v688 = vadd.f32 %v683, %v686
        %v689 = vadd.f32 %v684, %v687
        %s690 = sld [smem:[#allocation8 + $0x23]]
        %s691 = sld [smem:[#allocation8 + $0x54]]
        %v692 = vstv %s690
        %v693 = vmul.f32 %v692, %v570
        %v694 = vmul.f32 %v692, %v571
        %v695 = vadd.f32 %v688, %v693
        %v696 = vadd.f32 %v689, %v694
        %v697 = vstv %s691
        %v698 = vmul.f32 %v697, %v578
        %v699 = vmul.f32 %v697, %v579
        %v700 = vadd.f32 %v695, %v698
        %v701 = vadd.f32 %v696, %v699
        %s702 = sld [smem:[#allocation8 + $0x2a]]
        %s703 = sld [smem:[#allocation8 + $0x5b]]
        %v704 = vstv %s702
        %v705 = vmul.f32 %v704, %v600
        %v706 = vmul.f32 %v704, %v601
        %v707 = vadd.f32 %v700, %v705
        %v708 = vadd.f32 %v701, %v706
        %v709 = vstv %s703
        %v710 = vmul.f32 %v709, %v608
        %v711 = vmul.f32 %v709, %v609
        %v712 = vadd.f32 %v707, %v710
        %v713 = vadd.f32 %v708, %v711
        %714 = vrot.lane.b32.xlu0 %v712, 3
        %v715 = vpop.permute.xlu0 %714
        %716 = vrot.lane.b32.xlu0 %v713, 3
        %v717 = vpop.permute.xlu0 %716
        %vm718 = vcmp.lt.s32.totalorder %v427, 3
        %v719 = vsel %vm718, %v715, %v717
        %v720 = vsel %vm718, %v717, %v715
        %s721 = scalar_lea.vmem [#allocation6], 7
        %v722 = vld [vmem:[%s721] ss:$8 sm:$0x3]
        %v724 = vlaneseq
        %v725 = vshrl.u32 %v724, 7
        %v726 = vsub.s32 0, %v725
        %v727 = vrot.slane %v722, %v726
        %v728 = vlaneseq
        %v729 = vshrl.u32 %v728, 7
        %v730 = vsub.s32 1, %v729
        %v731 = vrot.slane %v722, %v730
        %v734 = vmul.f32 %v727, %v720
        %v735 = vmul.f32 %v731, %v719
        %v736 = vadd.f32 %v734, 0.0
        %v737 = vadd.f32 %v735, 0.0
        %s738 = sld [smem:[#allocation8 + $0x1]]
        %s739 = sld [smem:[#allocation8 + $0x32]]
        %v740 = vstv %s738
        %v741 = vmul.f32 %v740, %v442
        %v742 = vmul.f32 %v740, %v443
        %v743 = vadd.f32 %v741, 0.0
        %v744 = vadd.f32 %v742, 0.0
        %v745 = vstv %s739
        %v746 = vmul.f32 %v745, %v458
        %v747 = vmul.f32 %v745, %v459
        %v748 = vadd.f32 %v743, %v746
        %v749 = vadd.f32 %v744, %v747
        %s750 = sld [smem:[#allocation8 + $0x8]]
        %s751 = sld [smem:[#allocation8 + $0x39]]
        %v752 = vstv %s750
        %v753 = vmul.f32 %v752, %v480
        %v754 = vmul.f32 %v752, %v481
        %v755 = vadd.f32 %v748, %v753
        %v756 = vadd.f32 %v749, %v754
        %v757 = vstv %s751
        %v758 = vmul.f32 %v757, %v488
        %v759 = vmul.f32 %v757, %v489
        %v760 = vadd.f32 %v755, %v758
        %v761 = vadd.f32 %v756, %v759
        %s762 = sld [smem:[#allocation8 + $0xf]]
        %s763 = sld [smem:[#allocation8 + $0x40]]
        %v764 = vstv %s762
        %v765 = vmul.f32 %v764, %v510
        %v766 = vmul.f32 %v764, %v511
        %v767 = vadd.f32 %v760, %v765
        %v768 = vadd.f32 %v761, %v766
        %v769 = vstv %s763
        %v770 = vmul.f32 %v769, %v518
        %v771 = vmul.f32 %v769, %v519
        %v772 = vadd.f32 %v767, %v770
        %v773 = vadd.f32 %v768, %v771
        %s774 = sld [smem:[#allocation8 + $0x16]]
        %s775 = sld [smem:[#allocation8 + $0x47]]
        %v776 = vstv %s774
        %v777 = vmul.f32 %v776, %v384
        %v778 = vmul.f32 %v776, %v385
        %v779 = vmul.f32 %v776, %v386
        %v780 = vmul.f32 %v776, %v387
        %v785 = vsel %vm417, %v779, %v777
        %v786 = vsel %vm417, %v780, %v778
        %v789 = vadd.f32 %v772, %v785
        %v790 = vadd.f32 %v773, %v786
        %v791 = vstv %s775
        %v792 = vmul.f32 %v791, %v393
        %v793 = vmul.f32 %v791, %v399
        %v794 = vmul.f32 %v791, %v405
        %v795 = vmul.f32 %v791, %v411
        %v800 = vsel %vm417, %v794, %v792
        %v801 = vsel %vm417, %v795, %v793
        %v804 = vadd.f32 %v789, %v800
        %v805 = vadd.f32 %v790, %v801
        %s806 = sld [smem:[#allocation8 + $0x1d]]
        %s807 = sld [smem:[#allocation8 + $0x4e]]
        %v808 = vstv %s806
        %v809 = vmul.f32 %v808, %v540
        %v810 = vmul.f32 %v808, %v541
        %v811 = vadd.f32 %v804, %v809
        %v812 = vadd.f32 %v805, %v810
        %v813 = vstv %s807
        %v814 = vmul.f32 %v813, %v548
        %v815 = vmul.f32 %v813, %v549
        %v816 = vadd.f32 %v811, %v814
        %v817 = vadd.f32 %v812, %v815
        %s818 = sld [smem:[#allocation8 + $0x24]]
        %s819 = sld [smem:[#allocation8 + $0x55]]
        %v820 = vstv %s818
        %v821 = vmul.f32 %v820, %v570
        %v822 = vmul.f32 %v820, %v571
        %v823 = vadd.f32 %v816, %v821
        %v824 = vadd.f32 %v817, %v822
        %v825 = vstv %s819
        %v826 = vmul.f32 %v825, %v578
        %v827 = vmul.f32 %v825, %v579
        %v828 = vadd.f32 %v823, %v826
        %v829 = vadd.f32 %v824, %v827
        %s830 = sld [smem:[#allocation8 + $0x2b]]
        %s831 = sld [smem:[#allocation8 + $0x5c]]
        %v832 = vstv %s830
        %v833 = vmul.f32 %v832, %v600
        %v834 = vmul.f32 %v832, %v601
        %v835 = vadd.f32 %v828, %v833
        %v836 = vadd.f32 %v829, %v834
        %v837 = vstv %s831
        %v838 = vmul.f32 %v837, %v608
        %v839 = vmul.f32 %v837, %v609
        %v840 = vadd.f32 %v835, %v838
        %v841 = vadd.f32 %v836, %v839
        %842 = vrot.lane.b32.xlu0 %v840, 2
        %v843 = vpop.permute.xlu0 %842
        %844 = vrot.lane.b32.xlu0 %v841, 2
        %v845 = vpop.permute.xlu0 %844
        %vm846 = vcmp.lt.s32.totalorder %v427, 2
        %v847 = vsel %vm846, %v843, %v845
        %v848 = vsel %vm846, %v845, %v843
        %s849 = scalar_lea.vmem [#allocation6], 16
        %v850 = vld [vmem:[%s849] ss:$8 sm:$0x3]
        %v852 = vlaneseq
        %v853 = vshrl.u32 %v852, 7
        %v854 = vsub.s32 0, %v853
        %v855 = vrot.slane %v850, %v854
        %v856 = vlaneseq
        %v857 = vshrl.u32 %v856, 7
        %v858 = vsub.s32 1, %v857
        %v859 = vrot.slane %v850, %v858
        %v862 = vmul.f32 %v855, %v848
        %v863 = vmul.f32 %v859, %v847
        %v864 = vadd.f32 %v736, %v862
        %v865 = vadd.f32 %v737, %v863
        %s866 = sld [smem:[#allocation8 + $0x2]]
        %s867 = sld [smem:[#allocation8 + $0x33]]
        %v868 = vstv %s866
        %v869 = vmul.f32 %v868, %v442
        %v870 = vmul.f32 %v868, %v443
        %v871 = vadd.f32 %v869, 0.0
        %v872 = vadd.f32 %v870, 0.0
        %v873 = vstv %s867
        %v874 = vmul.f32 %v873, %v458
        %v875 = vmul.f32 %v873, %v459
        %v876 = vadd.f32 %v871, %v874
        %v877 = vadd.f32 %v872, %v875
        %s878 = sld [smem:[#allocation8 + $0x9]]
        %s879 = sld [smem:[#allocation8 + $0x3a]]
        %v880 = vstv %s878
        %v881 = vmul.f32 %v880, %v480
        %v882 = vmul.f32 %v880, %v481
        %v883 = vadd.f32 %v876, %v881
        %v884 = vadd.f32 %v877, %v882
        %v885 = vstv %s879
        %v886 = vmul.f32 %v885, %v488
        %v887 = vmul.f32 %v885, %v489
        %v888 = vadd.f32 %v883, %v886
        %v889 = vadd.f32 %v884, %v887
        %s890 = sld [smem:[#allocation8 + $0x10]]
        %s891 = sld [smem:[#allocation8 + $0x41]]
        %v892 = vstv %s890
        %v893 = vmul.f32 %v892, %v510
        %v894 = vmul.f32 %v892, %v511
        %v895 = vadd.f32 %v888, %v893
        %v896 = vadd.f32 %v889, %v894
        %v897 = vstv %s891
        %v898 = vmul.f32 %v897, %v518
        %v899 = vmul.f32 %v897, %v519
        %v900 = vadd.f32 %v895, %v898
        %v901 = vadd.f32 %v896, %v899
        %s902 = sld [smem:[#allocation8 + $0x17]]
        %s903 = sld [smem:[#allocation8 + $0x48]]
        %v904 = vstv %s902
        %v905 = vmul.f32 %v904, %v384
        %v906 = vmul.f32 %v904, %v385
        %v907 = vmul.f32 %v904, %v386
        %v908 = vmul.f32 %v904, %v387
        %v913 = vsel %vm417, %v907, %v905
        %v914 = vsel %vm417, %v908, %v906
        %v917 = vadd.f32 %v900, %v913
        %v918 = vadd.f32 %v901, %v914
        %v919 = vstv %s903
        %v920 = vmul.f32 %v919, %v393
        %v921 = vmul.f32 %v919, %v399
        %v922 = vmul.f32 %v919, %v405
        %v923 = vmul.f32 %v919, %v411
        %v928 = vsel %vm417, %v922, %v920
        %v929 = vsel %vm417, %v923, %v921
        %v932 = vadd.f32 %v917, %v928
        %v933 = vadd.f32 %v918, %v929
        %s934 = sld [smem:[#allocation8 + $0x1e]]
        %s935 = sld [smem:[#allocation8 + $0x4f]]
        %v936 = vstv %s934
        %v937 = vmul.f32 %v936, %v540
        %v938 = vmul.f32 %v936, %v541
        %v939 = vadd.f32 %v932, %v937
        %v940 = vadd.f32 %v933, %v938
        %v941 = vstv %s935
        %v942 = vmul.f32 %v941, %v548
        %v943 = vmul.f32 %v941, %v549
        %v944 = vadd.f32 %v939, %v942
        %v945 = vadd.f32 %v940, %v943
        %s946 = sld [smem:[#allocation8 + $0x25]]
        %s947 = sld [smem:[#allocation8 + $0x56]]
        %v948 = vstv %s946
        %v949 = vmul.f32 %v948, %v570
        %v950 = vmul.f32 %v948, %v571
        %v951 = vadd.f32 %v944, %v949
        %v952 = vadd.f32 %v945, %v950
        %v953 = vstv %s947
        %v954 = vmul.f32 %v953, %v578
        %v955 = vmul.f32 %v953, %v579
        %v956 = vadd.f32 %v951, %v954
        %v957 = vadd.f32 %v952, %v955
        %s958 = sld [smem:[#allocation8 + $0x2c]]
        %s959 = sld [smem:[#allocation8 + $0x5d]]
        %v960 = vstv %s958
        %v961 = vmul.f32 %v960, %v600
        %v962 = vmul.f32 %v960, %v601
        %v963 = vadd.f32 %v956, %v961
        %v964 = vadd.f32 %v957, %v962
        %v965 = vstv %s959
        %v966 = vmul.f32 %v965, %v608
        %v967 = vmul.f32 %v965, %v609
        %v968 = vadd.f32 %v963, %v966
        %v969 = vadd.f32 %v964, %v967
        %970 = vrot.lane.b32.xlu0 %v968, 1
        %v971 = vpop.permute.xlu0 %970
        %972 = vrot.lane.b32.xlu0 %v969, 1
        %v973 = vpop.permute.xlu0 %972
        %vm974 = vcmp.lt.s32.totalorder %v427, 1
        %v975 = vsel %vm974, %v971, %v973
        %v976 = vsel %vm974, %v973, %v971
        %s977 = scalar_lea.vmem [#allocation6], 17
        %v978 = vld [vmem:[%s977] ss:$8 sm:$0x3]
        %v980 = vlaneseq
        %v981 = vshrl.u32 %v980, 7
        %v982 = vsub.s32 0, %v981
        %v983 = vrot.slane %v978, %v982
        %v984 = vlaneseq
        %v985 = vshrl.u32 %v984, 7
        %v986 = vsub.s32 1, %v985
        %v987 = vrot.slane %v978, %v986
        %v990 = vmul.f32 %v983, %v976
        %v991 = vmul.f32 %v987, %v975
        %v992 = vadd.f32 %v864, %v990
        %v993 = vadd.f32 %v865, %v991
        %s994 = sld [smem:[#allocation8 + $0x3]]
        %s995 = sld [smem:[#allocation8 + $0x34]]
        %v996 = vstv %s994
        %v997 = vmul.f32 %v996, %v442
        %v998 = vmul.f32 %v996, %v443
        %v999 = vadd.f32 %v997, 0.0
        %v1000 = vadd.f32 %v998, 0.0
        %v1001 = vstv %s995
        %v1002 = vmul.f32 %v1001, %v458
        %v1003 = vmul.f32 %v1001, %v459
        %v1004 = vadd.f32 %v999, %v1002
        %v1005 = vadd.f32 %v1000, %v1003
        %s1006 = sld [smem:[#allocation8 + $0xa]]
        %s1007 = sld [smem:[#allocation8 + $0x3b]]
        %v1008 = vstv %s1006
        %v1009 = vmul.f32 %v1008, %v480
        %v1010 = vmul.f32 %v1008, %v481
        %v1011 = vadd.f32 %v1004, %v1009
        %v1012 = vadd.f32 %v1005, %v1010
        %v1013 = vstv %s1007
        %v1014 = vmul.f32 %v1013, %v488
        %v1015 = vmul.f32 %v1013, %v489
        %v1016 = vadd.f32 %v1011, %v1014
        %v1017 = vadd.f32 %v1012, %v1015
        %s1018 = sld [smem:[#allocation8 + $0x11]]
        %s1019 = sld [smem:[#allocation8 + $0x42]]
        %v1020 = vstv %s1018
        %v1021 = vmul.f32 %v1020, %v510
        %v1022 = vmul.f32 %v1020, %v511
        %v1023 = vadd.f32 %v1016, %v1021
        %v1024 = vadd.f32 %v1017, %v1022
        %v1025 = vstv %s1019
        %v1026 = vmul.f32 %v1025, %v518
        %v1027 = vmul.f32 %v1025, %v519
        %v1028 = vadd.f32 %v1023, %v1026
        %v1029 = vadd.f32 %v1024, %v1027
        %s1030 = sld [smem:[#allocation8 + $0x18]]
        %s1031 = sld [smem:[#allocation8 + $0x49]]
        %v1032 = vstv %s1030
        %v1033 = vmul.f32 %v1032, %v384
        %v1034 = vmul.f32 %v1032, %v385
        %v1035 = vmul.f32 %v1032, %v386
        %v1036 = vmul.f32 %v1032, %v387
        %v1041 = vsel %vm417, %v1035, %v1033
        %v1042 = vsel %vm417, %v1036, %v1034
        %v1045 = vadd.f32 %v1028, %v1041
        %v1046 = vadd.f32 %v1029, %v1042
        %v1047 = vstv %s1031
        %v1048 = vmul.f32 %v1047, %v393
        %v1049 = vmul.f32 %v1047, %v399
        %v1050 = vmul.f32 %v1047, %v405
        %v1051 = vmul.f32 %v1047, %v411
        %v1056 = vsel %vm417, %v1050, %v1048
        %v1057 = vsel %vm417, %v1051, %v1049
        %v1060 = vadd.f32 %v1045, %v1056
        %v1061 = vadd.f32 %v1046, %v1057
        %s1062 = sld [smem:[#allocation8 + $0x1f]]
        %s1063 = sld [smem:[#allocation8 + $0x50]]
        %v1064 = vstv %s1062
        %v1065 = vmul.f32 %v1064, %v540
        %v1066 = vmul.f32 %v1064, %v541
        %v1067 = vadd.f32 %v1060, %v1065
        %v1068 = vadd.f32 %v1061, %v1066
        %v1069 = vstv %s1063
        %v1070 = vmul.f32 %v1069, %v548
        %v1071 = vmul.f32 %v1069, %v549
        %v1072 = vadd.f32 %v1067, %v1070
        %v1073 = vadd.f32 %v1068, %v1071
        %s1074 = sld [smem:[#allocation8 + $0x26]]
        %s1075 = sld [smem:[#allocation8 + $0x57]]
        %v1076 = vstv %s1074
        %v1077 = vmul.f32 %v1076, %v570
        %v1078 = vmul.f32 %v1076, %v571
        %v1079 = vadd.f32 %v1072, %v1077
        %v1080 = vadd.f32 %v1073, %v1078
        %v1081 = vstv %s1075
        %v1082 = vmul.f32 %v1081, %v578
        %v1083 = vmul.f32 %v1081, %v579
        %v1084 = vadd.f32 %v1079, %v1082
        %v1085 = vadd.f32 %v1080, %v1083
        %s1086 = sld [smem:[#allocation8 + $0x2d]]
        %s1087 = sld [smem:[#allocation8 + $0x5e]]
        %v1088 = vstv %s1086
        %v1089 = vmul.f32 %v1088, %v600
        %v1090 = vmul.f32 %v1088, %v601
        %v1091 = vadd.f32 %v1084, %v1089
        %v1092 = vadd.f32 %v1085, %v1090
        %v1093 = vstv %s1087
        %v1094 = vmul.f32 %v1093, %v608
        %v1095 = vmul.f32 %v1093, %v609
        %v1096 = vadd.f32 %v1091, %v1094
        %v1097 = vadd.f32 %v1092, %v1095
        %s1098 = scalar_lea.vmem [#allocation6], 18
        %v1099 = vld [vmem:[%s1098] ss:$8 sm:$0x3]
        %v1101 = vlaneseq
        %v1102 = vshrl.u32 %v1101, 7
        %v1103 = vsub.s32 0, %v1102
        %v1104 = vrot.slane %v1099, %v1103
        %v1105 = vlaneseq
        %v1106 = vshrl.u32 %v1105, 7
        %v1107 = vsub.s32 1, %v1106
        %v1108 = vrot.slane %v1099, %v1107
        %v1111 = vmul.f32 %v1104, %v1096
        %v1112 = vmul.f32 %v1108, %v1097
        %v1113 = vadd.f32 %v992, %v1111
        %v1114 = vadd.f32 %v993, %v1112
        %s1115 = sld [smem:[#allocation8 + $0x4]]
        %s1116 = sld [smem:[#allocation8 + $0x35]]
        %v1117 = vstv %s1115
        %v1118 = vmul.f32 %v1117, %v442
        %v1119 = vmul.f32 %v1117, %v443
        %v1120 = vadd.f32 %v1118, 0.0
        %v1121 = vadd.f32 %v1119, 0.0
        %v1122 = vstv %s1116
        %v1123 = vmul.f32 %v1122, %v458
        %v1124 = vmul.f32 %v1122, %v459
        %v1125 = vadd.f32 %v1120, %v1123
        %v1126 = vadd.f32 %v1121, %v1124
        %s1127 = sld [smem:[#allocation8 + $0xb]]
        %s1128 = sld [smem:[#allocation8 + $0x3c]]
        %v1129 = vstv %s1127
        %v1130 = vmul.f32 %v1129, %v480
        %v1131 = vmul.f32 %v1129, %v481
        %v1132 = vadd.f32 %v1125, %v1130
        %v1133 = vadd.f32 %v1126, %v1131
        %v1134 = vstv %s1128
        %v1135 = vmul.f32 %v1134, %v488
        %v1136 = vmul.f32 %v1134, %v489
        %v1137 = vadd.f32 %v1132, %v1135
        %v1138 = vadd.f32 %v1133, %v1136
        %s1139 = sld [smem:[#allocation8 + $0x12]]
        %s1140 = sld [smem:[#allocation8 + $0x43]]
        %v1141 = vstv %s1139
        %v1142 = vmul.f32 %v1141, %v510
        %v1143 = vmul.f32 %v1141, %v511
        %v1144 = vadd.f32 %v1137, %v1142
        %v1145 = vadd.f32 %v1138, %v1143
        %v1146 = vstv %s1140
        %v1147 = vmul.f32 %v1146, %v518
        %v1148 = vmul.f32 %v1146, %v519
        %v1149 = vadd.f32 %v1144, %v1147
        %v1150 = vadd.f32 %v1145, %v1148
        %s1151 = sld [smem:[#allocation8 + $0x19]]
        %s1152 = sld [smem:[#allocation8 + $0x4a]]
        %v1153 = vstv %s1151
        %v1154 = vmul.f32 %v1153, %v384
        %v1155 = vmul.f32 %v1153, %v385
        %v1156 = vmul.f32 %v1153, %v386
        %v1157 = vmul.f32 %v1153, %v387
        %v1162 = vsel %vm417, %v1156, %v1154
        %v1163 = vsel %vm417, %v1157, %v1155
        %v1166 = vadd.f32 %v1149, %v1162
        %v1167 = vadd.f32 %v1150, %v1163
        %v1168 = vstv %s1152
        %v1169 = vmul.f32 %v1168, %v393
        %v1170 = vmul.f32 %v1168, %v399
        %v1171 = vmul.f32 %v1168, %v405
        %v1172 = vmul.f32 %v1168, %v411
        %v1177 = vsel %vm417, %v1171, %v1169
        %v1178 = vsel %vm417, %v1172, %v1170
        %v1181 = vadd.f32 %v1166, %v1177
        %v1182 = vadd.f32 %v1167, %v1178
        %s1183 = sld [smem:[#allocation8 + $0x20]]
        %s1184 = sld [smem:[#allocation8 + $0x51]]
        %v1185 = vstv %s1183
        %v1186 = vmul.f32 %v1185, %v540
        %v1187 = vmul.f32 %v1185, %v541
        %v1188 = vadd.f32 %v1181, %v1186
        %v1189 = vadd.f32 %v1182, %v1187
        %v1190 = vstv %s1184
        %v1191 = vmul.f32 %v1190, %v548
        %v1192 = vmul.f32 %v1190, %v549
        %v1193 = vadd.f32 %v1188, %v1191
        %v1194 = vadd.f32 %v1189, %v1192
        %s1195 = sld [smem:[#allocation8 + $0x27]]
        %s1196 = sld [smem:[#allocation8 + $0x58]]
        %v1197 = vstv %s1195
        %v1198 = vmul.f32 %v1197, %v570
        %v1199 = vmul.f32 %v1197, %v571
        %v1200 = vadd.f32 %v1193, %v1198
        %v1201 = vadd.f32 %v1194, %v1199
        %v1202 = vstv %s1196
        %v1203 = vmul.f32 %v1202, %v578
        %v1204 = vmul.f32 %v1202, %v579
        %v1205 = vadd.f32 %v1200, %v1203
        %v1206 = vadd.f32 %v1201, %v1204
        %s1207 = sld [smem:[#allocation8 + $0x2e]]
        %s1208 = sld [smem:[#allocation8 + $0x5f]]
        %v1209 = vstv %s1207
        %v1210 = vmul.f32 %v1209, %v600
        %v1211 = vmul.f32 %v1209, %v601
        %v1212 = vadd.f32 %v1205, %v1210
        %v1213 = vadd.f32 %v1206, %v1211
        %v1214 = vstv %s1208
        %v1215 = vmul.f32 %v1214, %v608
        %v1216 = vmul.f32 %v1214, %v609
        %v1217 = vadd.f32 %v1212, %v1215
        %v1218 = vadd.f32 %v1213, %v1216
        %1219 = vrot.lane.b32.xlu0 %v1217, 127
        %v1220 = vpop.permute.xlu0 %1219
        %1221 = vrot.lane.b32.xlu0 %v1218, 127
        %v1222 = vpop.permute.xlu0 %1221
        %vm1223 = vcmp.lt.s32.totalorder %v427, 127
        %v1224 = vsel %vm1223, %v1220, %v1222
        %v1225 = vsel %vm1223, %v1222, %v1220
        %s1226 = scalar_lea.vmem [#allocation6], 19
        %v1227 = vld [vmem:[%s1226] ss:$8 sm:$0x3]
        %v1229 = vlaneseq
        %v1230 = vshrl.u32 %v1229, 7
        %v1231 = vsub.s32 0, %v1230
        %v1232 = vrot.slane %v1227, %v1231
        %v1233 = vlaneseq
        %v1234 = vshrl.u32 %v1233, 7
        %v1235 = vsub.s32 1, %v1234
        %v1236 = vrot.slane %v1227, %v1235
        %v1239 = vmul.f32 %v1232, %v1224
        %v1240 = vmul.f32 %v1236, %v1225
        %v1241 = vadd.f32 %v1113, %v1239
        %v1242 = vadd.f32 %v1114, %v1240
        %s1243 = sld [smem:[#allocation8 + $0x5]]
        %s1244 = sld [smem:[#allocation8 + $0x36]]
        %v1245 = vstv %s1243
        %v1246 = vmul.f32 %v1245, %v442
        %v1247 = vmul.f32 %v1245, %v443
        %v1248 = vadd.f32 %v1246, 0.0
        %v1249 = vadd.f32 %v1247, 0.0
        %v1250 = vstv %s1244
        %v1251 = vmul.f32 %v1250, %v458
        %v1252 = vmul.f32 %v1250, %v459
        %v1253 = vadd.f32 %v1248, %v1251
        %v1254 = vadd.f32 %v1249, %v1252
        %s1255 = sld [smem:[#allocation8 + $0xc]]
        %s1256 = sld [smem:[#allocation8 + $0x3d]]
        %v1257 = vstv %s1255
        %v1258 = vmul.f32 %v1257, %v480
        %v1259 = vmul.f32 %v1257, %v481
        %v1260 = vadd.f32 %v1253, %v1258
        %v1261 = vadd.f32 %v1254, %v1259
        %v1262 = vstv %s1256
        %v1263 = vmul.f32 %v1262, %v488
        %v1264 = vmul.f32 %v1262, %v489
        %v1265 = vadd.f32 %v1260, %v1263
        %v1266 = vadd.f32 %v1261, %v1264
        %s1267 = sld [smem:[#allocation8 + $0x13]]
        %s1268 = sld [smem:[#allocation8 + $0x44]]
        %v1269 = vstv %s1267
        %v1270 = vmul.f32 %v1269, %v510
        %v1271 = vmul.f32 %v1269, %v511
        %v1272 = vadd.f32 %v1265, %v1270
        %v1273 = vadd.f32 %v1266, %v1271
        %v1274 = vstv %s1268
        %v1275 = vmul.f32 %v1274, %v518
        %v1276 = vmul.f32 %v1274, %v519
        %v1277 = vadd.f32 %v1272, %v1275
        %v1278 = vadd.f32 %v1273, %v1276
        %s1279 = sld [smem:[#allocation8 + $0x1a]]
        %s1280 = sld [smem:[#allocation8 + $0x4b]]
        %v1281 = vstv %s1279
        %v1282 = vmul.f32 %v1281, %v384
        %v1283 = vmul.f32 %v1281, %v385
        %v1284 = vmul.f32 %v1281, %v386
        %v1285 = vmul.f32 %v1281, %v387
        %v1290 = vsel %vm417, %v1284, %v1282
        %v1291 = vsel %vm417, %v1285, %v1283
        %v1294 = vadd.f32 %v1277, %v1290
        %v1295 = vadd.f32 %v1278, %v1291
        %v1296 = vstv %s1280
        %v1297 = vmul.f32 %v1296, %v393
        %v1298 = vmul.f32 %v1296, %v399
        %v1299 = vmul.f32 %v1296, %v405
        %v1300 = vmul.f32 %v1296, %v411
        %v1305 = vsel %vm417, %v1299, %v1297
        %v1306 = vsel %vm417, %v1300, %v1298
        %v1309 = vadd.f32 %v1294, %v1305
        %v1310 = vadd.f32 %v1295, %v1306
        %s1311 = sld [smem:[#allocation8 + $0x21]]
        %s1312 = sld [smem:[#allocation8 + $0x52]]
        %v1313 = vstv %s1311
        %v1314 = vmul.f32 %v1313, %v540
        %v1315 = vmul.f32 %v1313, %v541
        %v1316 = vadd.f32 %v1309, %v1314
        %v1317 = vadd.f32 %v1310, %v1315
        %v1318 = vstv %s1312
        %v1319 = vmul.f32 %v1318, %v548
        %v1320 = vmul.f32 %v1318, %v549
        %v1321 = vadd.f32 %v1316, %v1319
        %v1322 = vadd.f32 %v1317, %v1320
        %s1323 = sld [smem:[#allocation8 + $0x28]]
        %s1324 = sld [smem:[#allocation8 + $0x59]]
        %v1325 = vstv %s1323
        %v1326 = vmul.f32 %v1325, %v570
        %v1327 = vmul.f32 %v1325, %v571
        %v1328 = vadd.f32 %v1321, %v1326
        %v1329 = vadd.f32 %v1322, %v1327
        %v1330 = vstv %s1324
        %v1331 = vmul.f32 %v1330, %v578
        %v1332 = vmul.f32 %v1330, %v579
        %v1333 = vadd.f32 %v1328, %v1331
        %v1334 = vadd.f32 %v1329, %v1332
        %s1335 = sld [smem:[#allocation8 + $0x2f]]
        %s1336 = sld [smem:[#allocation8 + $0x60]]
        %v1337 = vstv %s1335
        %v1338 = vmul.f32 %v1337, %v600
        %v1339 = vmul.f32 %v1337, %v601
        %v1340 = vadd.f32 %v1333, %v1338
        %v1341 = vadd.f32 %v1334, %v1339
        %v1342 = vstv %s1336
        %v1343 = vmul.f32 %v1342, %v608
        %v1344 = vmul.f32 %v1342, %v609
        %v1345 = vadd.f32 %v1340, %v1343
        %v1346 = vadd.f32 %v1341, %v1344
        %1347 = vrot.lane.b32.xlu0 %v1345, 126
        %v1348 = vpop.permute.xlu0 %1347
        %1349 = vrot.lane.b32.xlu0 %v1346, 126
        %v1350 = vpop.permute.xlu0 %1349
        %vm1351 = vcmp.lt.s32.totalorder %v427, 126
        %v1352 = vsel %vm1351, %v1348, %v1350
        %v1353 = vsel %vm1351, %v1350, %v1348
        %s1354 = scalar_lea.vmem [#allocation6], 20
        %v1355 = vld [vmem:[%s1354] ss:$8 sm:$0x3]
        %v1357 = vlaneseq
        %v1358 = vshrl.u32 %v1357, 7
        %v1359 = vsub.s32 0, %v1358
        %v1360 = vrot.slane %v1355, %v1359
        %v1361 = vlaneseq
        %v1362 = vshrl.u32 %v1361, 7
        %v1363 = vsub.s32 1, %v1362
        %v1364 = vrot.slane %v1355, %v1363
        %v1367 = vmul.f32 %v1360, %v1352
        %v1368 = vmul.f32 %v1364, %v1353
        %v1369 = vadd.f32 %v1241, %v1367
        %v1370 = vadd.f32 %v1242, %v1368
        %s1371 = sld [smem:[#allocation8 + $0x6]]
        %s1372 = sld [smem:[#allocation8 + $0x37]]
        %v1373 = vstv %s1371
        %v1374 = vmul.f32 %v1373, %v442
        %v1375 = vmul.f32 %v1373, %v443
        %v1376 = vadd.f32 %v1374, 0.0
        %v1377 = vadd.f32 %v1375, 0.0
        %v1378 = vstv %s1372
        %v1379 = vmul.f32 %v1378, %v458
        %v1380 = vmul.f32 %v1378, %v459
        %v1381 = vadd.f32 %v1376, %v1379
        %v1382 = vadd.f32 %v1377, %v1380
        %s1383 = sld [smem:[#allocation8 + $0xd]]
        %s1384 = sld [smem:[#allocation8 + $0x3e]]
        %v1385 = vstv %s1383
        %v1386 = vmul.f32 %v1385, %v480
        %v1387 = vmul.f32 %v1385, %v481
        %v1388 = vadd.f32 %v1381, %v1386
        %v1389 = vadd.f32 %v1382, %v1387
        %v1390 = vstv %s1384
        %v1391 = vmul.f32 %v1390, %v488
        %v1392 = vmul.f32 %v1390, %v489
        %v1393 = vadd.f32 %v1388, %v1391
        %v1394 = vadd.f32 %v1389, %v1392
        %s1395 = sld [smem:[#allocation8 + $0x14]]
        %s1396 = sld [smem:[#allocation8 + $0x45]]
        %v1397 = vstv %s1395
        %v1398 = vmul.f32 %v1397, %v510
        %v1399 = vmul.f32 %v1397, %v511
        %v1400 = vadd.f32 %v1393, %v1398
        %v1401 = vadd.f32 %v1394, %v1399
        %v1402 = vstv %s1396
        %v1403 = vmul.f32 %v1402, %v518
        %v1404 = vmul.f32 %v1402, %v519
        %v1405 = vadd.f32 %v1400, %v1403
        %v1406 = vadd.f32 %v1401, %v1404
        %s1407 = sld [smem:[#allocation8 + $0x1b]]
        %s1408 = sld [smem:[#allocation8 + $0x4c]]
        %v1409 = vstv %s1407
        %v1410 = vmul.f32 %v1409, %v384
        %v1411 = vmul.f32 %v1409, %v385
        %v1412 = vmul.f32 %v1409, %v386
        %v1413 = vmul.f32 %v1409, %v387
        %v1418 = vsel %vm417, %v1412, %v1410
        %v1419 = vsel %vm417, %v1413, %v1411
        %v1422 = vadd.f32 %v1405, %v1418
        %v1423 = vadd.f32 %v1406, %v1419
        %v1424 = vstv %s1408
        %v1425 = vmul.f32 %v1424, %v393
        %v1426 = vmul.f32 %v1424, %v399
        %v1427 = vmul.f32 %v1424, %v405
        %v1428 = vmul.f32 %v1424, %v411
        %v1433 = vsel %vm417, %v1427, %v1425
        %v1434 = vsel %vm417, %v1428, %v1426
        %v1437 = vadd.f32 %v1422, %v1433
        %v1438 = vadd.f32 %v1423, %v1434
        %s1439 = sld [smem:[#allocation8 + $0x22]]
        %s1440 = sld [smem:[#allocation8 + $0x53]]
        %v1441 = vstv %s1439
        %v1442 = vmul.f32 %v1441, %v540
        %v1443 = vmul.f32 %v1441, %v541
        %v1444 = vadd.f32 %v1437, %v1442
        %v1445 = vadd.f32 %v1438, %v1443
        %v1446 = vstv %s1440
        %v1447 = vmul.f32 %v1446, %v548
        %v1448 = vmul.f32 %v1446, %v549
        %v1449 = vadd.f32 %v1444, %v1447
        %v1450 = vadd.f32 %v1445, %v1448
        %s1451 = sld [smem:[#allocation8 + $0x29]]
        %s1452 = sld [smem:[#allocation8 + $0x5a]]
        %v1453 = vstv %s1451
        %v1454 = vmul.f32 %v1453, %v570
        %v1455 = vmul.f32 %v1453, %v571
        %v1456 = vadd.f32 %v1449, %v1454
        %v1457 = vadd.f32 %v1450, %v1455
        %v1458 = vstv %s1452
        %v1459 = vmul.f32 %v1458, %v578
        %v1460 = vmul.f32 %v1458, %v579
        %v1461 = vadd.f32 %v1456, %v1459
        %v1462 = vadd.f32 %v1457, %v1460
        %s1463 = sld [smem:[#allocation8 + $0x30]]
        %s1464 = sld [smem:[#allocation8 + $0x61]]
        %v1465 = vstv %s1463
        %v1466 = vmul.f32 %v1465, %v600
        %v1467 = vmul.f32 %v1465, %v601
        %v1468 = vadd.f32 %v1461, %v1466
        %v1469 = vadd.f32 %v1462, %v1467
        %v1470 = vstv %s1464
        %v1471 = vmul.f32 %v1470, %v608
        %v1472 = vmul.f32 %v1470, %v609
        %v1473 = vadd.f32 %v1468, %v1471
        %v1474 = vadd.f32 %v1469, %v1472
        %1475 = vrot.lane.b32.xlu0 %v1473, 125
        %v1476 = vpop.permute.xlu0 %1475
        %1477 = vrot.lane.b32.xlu0 %v1474, 125
        %v1478 = vpop.permute.xlu0 %1477
        %vm1479 = vcmp.lt.s32.totalorder %v427, 125
        %v1480 = vsel %vm1479, %v1476, %v1478
        %v1481 = vsel %vm1479, %v1478, %v1476
        %s1482 = scalar_lea.vmem [#allocation6], 21
        %v1483 = vld [vmem:[%s1482] ss:$8 sm:$0x3]
        %v1485 = vlaneseq
        %v1486 = vshrl.u32 %v1485, 7
        %v1487 = vsub.s32 0, %v1486
        %v1488 = vrot.slane %v1483, %v1487
        %v1489 = vlaneseq
        %v1490 = vshrl.u32 %v1489, 7
        %v1491 = vsub.s32 1, %v1490
        %v1492 = vrot.slane %v1483, %v1491
        %v1495 = vmul.f32 %v1488, %v1480
        %v1496 = vmul.f32 %v1492, %v1481
        %v1497 = vadd.f32 %v1369, %v1495
        %v1498 = vadd.f32 %v1370, %v1496
        %s1499 = sld [smem:[#allocation8 + $0x63]]
        %v1500 = vstv %s1499
        %v1501 = vadd.f32 %v1497, %v1500
        %v1502 = vadd.f32 %v1498, %v1500
        %v1503 = vsub.f32 0.0, %v1501
        %v1504 = vsub.f32 0.0, %v1502
        %v1505 = vmul.f32 %v1503, 1.442695
        %v1506 = vpow.pop %v1505
        %v1507 = vmul.f32 %v1504, 1.442695
        %v1508 = vpow.pop %v1507
        %v1509 = vadd.f32 %v1506, 1.0
        %v1510 = vadd.f32 %v1508, 1.0
        %v1511 = vrcp.pop %v1509
        %v1512 = vrcp.pop %v1510
        %v1513 = vld [vmem:[%s4] sm:$0xff]
        %v1514 = vld [vmem:[%s4 + $0x8] sm:$0xff]
        %v1515 = vld [vmem:[%s2] sm:$0xf]
        %v1516 = vld [vmem:[%s2 + $0x4] sm:$0xf]
        %v1517 = vld [vmem:[%s3] sm:$0xf]
        %v1518 = vld [vmem:[%s3 + $0x4] sm:$0xf]
        %v1519 = vld [vmem:[%s350] sm:$0xff]
        %v1520 = vpack.c.bf16 %v355, %v355
        %v1521 = vpack.c.bf16 %v356, %v356
        %v1524 = vunpack.c.l.b16 %v1517
        %v1525 = vunpack.c.l.b16 %v1518
        %v1526 = vpack.c.b16 %v1525, %v1524
        %vm1527 = vcmask 64512
        %v1529 = vsel %vm1527, %v1526, 0
        %vm1531 = vcmask 1043456
        %v1533 = vsel %vm1531, %v1520, 0
        %v1536 = vsel %vm1531, %v1521, 0
        %1538 = vmatprep.subr.bf16.mxu0 %v1536
        %1539 = vmatpush1.bf16.msra.mxu0 %v1533
        %1540 = vmatprep.subr.bf16.mxu0 0
        %1541 = vmatpush1.bf16.msra.mxu0 0
        %1542 = vmatprep.subr.bf16.mxu0 0
        %1543 = vmatpush1.bf16.msra.mxu0 0
        %1544 = vmatprep.subr.bf16.mxu0 0
        %1545 = vmatpush1.bf16.msra.mxu0 0
        %1546 = vmatprep.subr.bf16.mxu0 0
        %1547 = vmatpush1.bf16.msra.mxu0 0
        %1548 = vmatprep.subr.bf16.mxu0 0
        %1549 = vmatpush1.bf16.msra.mxu0 0
        %1550 = vmatprep.subr.bf16.mxu0 0
        %1551 = vmatpush1.bf16.msra.mxu0 0
        %1552 = vmatprep.subr.bf16.mxu0 0
        %1553 = vmatpush1.bf16.msra.mxu0 0
        %1554 = vmatprep.subr.bf16.mxu0 0
        %1555 = vmatpush1.bf16.msra.mxu0 0
        %1556 = vmatprep.subr.bf16.mxu0 0
        %1557 = vmatpush1.bf16.msra.mxu0 0
        %1558 = vmatprep.subr.bf16.mxu0 0
        %1559 = vmatpush1.bf16.msra.mxu0 0
        %1560 = vmatprep.subr.bf16.mxu0 0
        %1561 = vmatpush1.bf16.msra.mxu0 0
        %1562 = vmatprep.subr.bf16.mxu0 0
        %1563 = vmatpush1.bf16.msra.mxu0 0
        %1564 = vmatprep.subr.bf16.mxu0 0
        %1565 = vmatpush1.bf16.msra.mxu0 0
        %1566 = vmatprep.subr.bf16.mxu0 0
        %1567 = vmatpush1.bf16.msra.mxu0 0
        %1568 = vmatprep.subr.bf16.mxu0 0
        %1569 = vmatpush1.bf16.msra.mxu0 0
        %1570 = vmatprep.mubr.bf16.mxu0 0
        %1571 = vmatmul.mubr.bf16.gmra.mrb[0].mxu0 %v1529
        %v1572 = vpop.f32.mrb[0].mxu0
        %v1573 = vadd.f32 0.0, %v1572
        %v1574 = vpop.f32.mrb[0].mxu0
        %v1575 = vadd.f32 0.0, %v1574
        %v1576 = vpop.f32.mrb[0].mxu0
        %v1577 = vadd.f32 0.0, %v1576
        %v1578 = vpop.f32.mrb[0].mxu0
        %v1579 = vadd.f32 0.0, %v1578
        %1580 = vdwg.mxu0
        %v1583 = vunpack.c.l.b16 %v1515
        %v1584 = vunpack.c.l.b16 %v1516
        %v1585 = vpack.c.b16 %v1584, %v1583
        %v1587 = vunpack.c.l.b16 %v1519
        %v1588 = vunpack.c.h.b16 %v1519
        %v1589 = vpack.c.b16 %v1587, %v1587
        %v1590 = vpack.c.b16 %v1588, %v1588
        %v1592 = vsel %vm1527, %v1585, 0
        %v1595 = vsel %vm1531, %v1589, 0
        %v1598 = vsel %vm1531, %v1590, 0
        %1600 = vmatprep.subr.bf16.mxu0 %v1598
        %1601 = vmatpush1.bf16.msra.mxu0 %v1595
        %1602 = vmatprep.subr.bf16.mxu0 0
        %1603 = vmatpush1.bf16.msra.mxu0 0
        %1604 = vmatprep.subr.bf16.mxu0 0
        %1605 = vmatpush1.bf16.msra.mxu0 0
        %1606 = vmatprep.subr.bf16.mxu0 0
        %1607 = vmatpush1.bf16.msra.mxu0 0
        %1608 = vmatprep.subr.bf16.mxu0 0
        %1609 = vmatpush1.bf16.msra.mxu0 0
        %1610 = vmatprep.subr.bf16.mxu0 0
        %1611 = vmatpush1.bf16.msra.mxu0 0
        %1612 = vmatprep.subr.bf16.mxu0 0
        %1613 = vmatpush1.bf16.msra.mxu0 0
        %1614 = vmatprep.subr.bf16.mxu0 0
        %1615 = vmatpush1.bf16.msra.mxu0 0
        %1616 = vmatprep.subr.bf16.mxu0 0
        %1617 = vmatpush1.bf16.msra.mxu0 0
        %1618 = vmatprep.subr.bf16.mxu0 0
        %1619 = vmatpush1.bf16.msra.mxu0 0
        %1620 = vmatprep.subr.bf16.mxu0 0
        %1621 = vmatpush1.bf16.msra.mxu0 0
        %1622 = vmatprep.subr.bf16.mxu0 0
        %1623 = vmatpush1.bf16.msra.mxu0 0
        %1624 = vmatprep.subr.bf16.mxu0 0
        %1625 = vmatpush1.bf16.msra.mxu0 0
        %1626 = vmatprep.subr.bf16.mxu0 0
        %1627 = vmatpush1.bf16.msra.mxu0 0
        %1628 = vmatprep.subr.bf16.mxu0 0
        %1629 = vmatpush1.bf16.msra.mxu0 0
        %1630 = vmatprep.subr.bf16.mxu0 0
        %1631 = vmatpush1.bf16.msra.mxu0 0
        %1632 = vmatprep.mubr.bf16.mxu0 0
        %1633 = vmatmul.mubr.bf16.gmra.mrb[0].mxu0 %v1592
        %v1634 = vpop.f32.mrb[0].mxu0
        %v1635 = vadd.f32 %v1573, %v1634
        %v1636 = vpop.f32.mrb[0].mxu0
        %v1637 = vadd.f32 %v1575, %v1636
        %v1638 = vpop.f32.mrb[0].mxu0
        %v1639 = vadd.f32 %v1577, %v1638
        %v1640 = vpop.f32.mrb[0].mxu0
        %v1641 = vadd.f32 %v1579, %v1640
        %1642 = vdwg.mxu0
        %1644 = vset.pattern.permute.xlu0 0
        %1645 = vperm.xlu0 %1644, %v1513
        %v1646 = vpop.permute.xlu0 %1645
        %1649 = vset.pattern.permute.xlu0 0
        %1650 = vperm.xlu0 %1649, %v1514
        %v1651 = vpop.permute.xlu0 %1650
        %v1653 = vadd.f32 %v1635, %v1646
        %v1654 = vadd.f32 %v1637, %v1646
        %v1655 = vadd.f32 %v1639, %v1651
        %v1656 = vadd.f32 %v1641, %v1651
        %v1657 = vmax.f32 %v1653, 0.0
        %v1658 = vmax.f32 %v1654, 0.0
        %v1659 = vmax.f32 %v1655, 0.0
        %v1660 = vmax.f32 %v1656, 0.0
        %1661 = vset.pattern.permute.xlu0 1
        %1662 = vperm.xlu0 %1661, %v1513
        %v1663 = vpop.permute.xlu0 %1662
        %1665 = vset.pattern.permute.xlu0 1
        %1666 = vperm.xlu0 %1665, %v1514
        %v1667 = vpop.permute.xlu0 %1666
        %v1669 = vmul.f32 %v1657, %v1663
        %v1670 = vmul.f32 %v1658, %v1663
        %v1671 = vmul.f32 %v1659, %v1667
        %v1672 = vmul.f32 %v1660, %v1667
        %v1673 = vadd.f32 %v1669, %v1671
        %v1674 = vrot.slane %v1673, 4
        %v1675 = vadd.f32 %v1673, %v1674
        %v1676 = vrot.slane %v1675, 2
        %v1677 = vadd.f32 %v1675, %v1676
        %v1678 = vrot.slane %v1677, 1
        %v1679 = vadd.f32 %v1677, %v1678
        %v1680 = vadd.f32 %v1670, %v1672
        %v1681 = vrot.slane %v1680, 4
        %v1682 = vadd.f32 %v1680, %v1681
        %v1683 = vrot.slane %v1682, 2
        %v1684 = vadd.f32 %v1682, %v1683
        %v1685 = vrot.slane %v1684, 1
        %v1686 = vadd.f32 %v1684, %v1685
        %s1687 = sld [smem:[#allocation8 + $0x62]]
        %v1688 = vstv %s1687
        %v1689 = vadd.f32 %v1679, %v1688
        %v1690 = vadd.f32 %v1686, %v1688
        %v1691 = vsub.f32 0.0, %v1689
        %v1692 = vsub.f32 0.0, %v1690
        %v1693 = vmul.f32 %v1691, 1.442695
        %v1694 = vpow.pop %v1693
        %v1695 = vmul.f32 %v1692, 1.442695
        %v1696 = vpow.pop %v1695
        %v1697 = vadd.f32 %v1694, 1.0
        %v1698 = vadd.f32 %v1696, 1.0
        %v1699 = vrcp.pop %v1697
        %v1700 = vrcp.pop %v1698
        %v1701 = vmul.f32 %v1699, %v1511
        %v1702 = vmul.f32 %v1700, %v1512
        %v1703 = vlaneseq
        %v1704 = vshrl.u32 %v1703, 7
        %v1705 = vsub.s32 0, %v1704
        %v1706 = vrot.slane %v1701, %v1705
        %v1707 = vlaneseq
        %v1708 = vshrl.u32 %v1707, 7
        %v1709 = vsub.s32 0, %v1708
        %v1710 = vrot.slane %v1702, %v1709
        %v1711 = vmul.f32 %v355, %v1706
        %v1712 = vmul.f32 %v356, %v1710
        %1713 = vst [vmem:[%s344] sm:$0xff] %v1711
        %1714 = vst [vmem:[%s344 + $0x8] sm:$0xff] %v1712
        %s1715 = scalar_lea.vmem %s350, 8
        %v1716 = vld [vmem:[%s1715] sm:$0xff]
        %v1717 = vpack.c.bf16 %v357, %v357
        %v1718 = vpack.c.bf16 %v358, %v358
        %v1720 = vsel %vm1531, %v1717, 0
        %v1723 = vsel %vm1531, %v1718, 0
        %1725 = vmatprep.subr.bf16.mxu0 %v1723
        %1726 = vmatpush1.bf16.msra.mxu0 %v1720
        %1727 = vmatprep.subr.bf16.mxu0 0
        %1728 = vmatpush1.bf16.msra.mxu0 0
        %1729 = vmatprep.subr.bf16.mxu0 0
        %1730 = vmatpush1.bf16.msra.mxu0 0
        %1731 = vmatprep.subr.bf16.mxu0 0
        %1732 = vmatpush1.bf16.msra.mxu0 0
        %1733 = vmatprep.subr.bf16.mxu0 0
        %1734 = vmatpush1.bf16.msra.mxu0 0
        %1735 = vmatprep.subr.bf16.mxu0 0
        %1736 = vmatpush1.bf16.msra.mxu0 0
        %1737 = vmatprep.subr.bf16.mxu0 0
        %1738 = vmatpush1.bf16.msra.mxu0 0
        %1739 = vmatprep.subr.bf16.mxu0 0
        %1740 = vmatpush1.bf16.msra.mxu0 0
        %1741 = vmatprep.subr.bf16.mxu0 0
        %1742 = vmatpush1.bf16.msra.mxu0 0
        %1743 = vmatprep.subr.bf16.mxu0 0
        %1744 = vmatpush1.bf16.msra.mxu0 0
        %1745 = vmatprep.subr.bf16.mxu0 0
        %1746 = vmatpush1.bf16.msra.mxu0 0
        %1747 = vmatprep.subr.bf16.mxu0 0
        %1748 = vmatpush1.bf16.msra.mxu0 0
        %1749 = vmatprep.subr.bf16.mxu0 0
        %1750 = vmatpush1.bf16.msra.mxu0 0
        %1751 = vmatprep.subr.bf16.mxu0 0
        %1752 = vmatpush1.bf16.msra.mxu0 0
        %1753 = vmatprep.subr.bf16.mxu0 0
        %1754 = vmatpush1.bf16.msra.mxu0 0
        %1755 = vmatprep.subr.bf16.mxu0 0
        %1756 = vmatpush1.bf16.msra.mxu0 0
        %1757 = vmatprep.mubr.bf16.mxu0 0
        %1758 = vmatmul.mubr.bf16.gmra.mrb[0].mxu0 %v1529
        %v1759 = vpop.f32.mrb[0].mxu0
        %v1760 = vadd.f32 0.0, %v1759
        %v1761 = vpop.f32.mrb[0].mxu0
        %v1762 = vadd.f32 0.0, %v1761
        %v1763 = vpop.f32.mrb[0].mxu0
        %v1764 = vadd.f32 0.0, %v1763
        %v1765 = vpop.f32.mrb[0].mxu0
        %v1766 = vadd.f32 0.0, %v1765
        %1767 = vdwg.mxu0
        %v1769 = vunpack.c.l.b16 %v1716
        %v1770 = vunpack.c.h.b16 %v1716
        %v1771 = vpack.c.b16 %v1769, %v1769
        %v1772 = vpack.c.b16 %v1770, %v1770
        %v1774 = vsel %vm1531, %v1771, 0
        %v1777 = vsel %vm1531, %v1772, 0
        %1779 = vmatprep.subr.bf16.mxu0 %v1777
        %1780 = vmatpush1.bf16.msra.mxu0 %v1774
        %1781 = vmatprep.subr.bf16.mxu0 0
        %1782 = vmatpush1.bf16.msra.mxu0 0
        %1783 = vmatprep.subr.bf16.mxu0 0
        %1784 = vmatpush1.bf16.msra.mxu0 0
        %1785 = vmatprep.subr.bf16.mxu0 0
        %1786 = vmatpush1.bf16.msra.mxu0 0
        %1787 = vmatprep.subr.bf16.mxu0 0
        %1788 = vmatpush1.bf16.msra.mxu0 0
        %1789 = vmatprep.subr.bf16.mxu0 0
        %1790 = vmatpush1.bf16.msra.mxu0 0
        %1791 = vmatprep.subr.bf16.mxu0 0
        %1792 = vmatpush1.bf16.msra.mxu0 0
        %1793 = vmatprep.subr.bf16.mxu0 0
        %1794 = vmatpush1.bf16.msra.mxu0 0
        %1795 = vmatprep.subr.bf16.mxu0 0
        %1796 = vmatpush1.bf16.msra.mxu0 0
        %1797 = vmatprep.subr.bf16.mxu0 0
        %1798 = vmatpush1.bf16.msra.mxu0 0
        %1799 = vmatprep.subr.bf16.mxu0 0
        %1800 = vmatpush1.bf16.msra.mxu0 0
        %1801 = vmatprep.subr.bf16.mxu0 0
        %1802 = vmatpush1.bf16.msra.mxu0 0
        %1803 = vmatprep.subr.bf16.mxu0 0
        %1804 = vmatpush1.bf16.msra.mxu0 0
        %1805 = vmatprep.subr.bf16.mxu0 0
        %1806 = vmatpush1.bf16.msra.mxu0 0
        %1807 = vmatprep.subr.bf16.mxu0 0
        %1808 = vmatpush1.bf16.msra.mxu0 0
        %1809 = vmatprep.subr.bf16.mxu0 0
        %1810 = vmatpush1.bf16.msra.mxu0 0
        %1811 = vmatprep.mubr.bf16.mxu0 0
        %1812 = vmatmul.mubr.bf16.gmra.mrb[0].mxu0 %v1592
        %v1813 = vpop.f32.mrb[0].mxu0
        %v1814 = vadd.f32 %v1760, %v1813
        %v1815 = vpop.f32.mrb[0].mxu0
        %v1816 = vadd.f32 %v1762, %v1815
        %v1817 = vpop.f32.mrb[0].mxu0
        %v1818 = vadd.f32 %v1764, %v1817
        %v1819 = vpop.f32.mrb[0].mxu0
        %v1820 = vadd.f32 %v1766, %v1819
        %1821 = vdwg.mxu0
        %v1822 = vadd.f32 %v1814, %v1646
        %v1823 = vadd.f32 %v1816, %v1646
        %v1824 = vadd.f32 %v1818, %v1651
        %v1825 = vadd.f32 %v1820, %v1651
        %v1826 = vmax.f32 %v1822, 0.0
        %v1827 = vmax.f32 %v1823, 0.0
        %v1828 = vmax.f32 %v1824, 0.0
        %v1829 = vmax.f32 %v1825, 0.0
        %v1830 = vmul.f32 %v1826, %v1663
        %v1831 = vmul.f32 %v1827, %v1663
        %v1832 = vmul.f32 %v1828, %v1667
        %v1833 = vmul.f32 %v1829, %v1667
        %v1834 = vadd.f32 %v1830, %v1832
        %v1835 = vrot.slane %v1834, 4
        %v1836 = vadd.f32 %v1834, %v1835
        %v1837 = vrot.slane %v1836, 2
        %v1838 = vadd.f32 %v1836, %v1837
        %v1839 = vrot.slane %v1838, 1
        %v1840 = vadd.f32 %v1838, %v1839
        %v1841 = vadd.f32 %v1831, %v1833
        %v1842 = vrot.slane %v1841, 4
        %v1843 = vadd.f32 %v1841, %v1842
        %v1844 = vrot.slane %v1843, 2
        %v1845 = vadd.f32 %v1843, %v1844
        %v1846 = vrot.slane %v1845, 1
        %v1847 = vadd.f32 %v1845, %v1846
        %s1848 = sld [smem:[#allocation8 + $0x62]]
        %v1849 = vstv %s1848
        %v1850 = vadd.f32 %v1840, %v1849
        %v1851 = vadd.f32 %v1847, %v1849
        %v1852 = vsub.f32 0.0, %v1850
        %v1853 = vsub.f32 0.0, %v1851
        %v1854 = vmul.f32 %v1852, 1.442695
        %v1855 = vpow.pop %v1854
        %v1856 = vmul.f32 %v1853, 1.442695
        %v1857 = vpow.pop %v1856
        %v1858 = vadd.f32 %v1855, 1.0
        %v1859 = vadd.f32 %v1857, 1.0
        %v1860 = vrcp.pop %v1858
        %v1861 = vrcp.pop %v1859
        %v1862 = vmul.f32 %v1860, %v1511
        %v1863 = vmul.f32 %v1861, %v1512
        %v1864 = vlaneseq
        %v1865 = vshrl.u32 %v1864, 7
        %v1866 = vsub.s32 1, %v1865
        %v1867 = vrot.slane %v1862, %v1866
        %v1868 = vlaneseq
        %v1869 = vshrl.u32 %v1868, 7
        %v1870 = vsub.s32 1, %v1869
        %v1871 = vrot.slane %v1863, %v1870
        %v1872 = vmul.f32 %v357, %v1867
        %v1873 = vmul.f32 %v358, %v1871
        %s1874 = scalar_lea.vmem %s344, 16 [#allocation9]
        %1875 = vst [vmem:[%s1874] sm:$0xff] %v1872
        %1876 = vst [vmem:[%s1874 + $0x8] sm:$0xff] %v1873
        %s1877 = sand.u32 %s191, 1
        %s1878 = scalar_lea.sflag [#allocation4], %s1877
        %s1879 = sand.u32 %s191, 1
        %s1880 = smul.addr %s1879, 32
        %s1881 = scalar_lea.vmem [#allocation9], %s1880
        // Predicated region
        $region61: #{tpu_custom_call.1} parent=47 // pred_check
          %p1882 = pneg %p201
        $region62: #{tpu_custom_call.1} parent=47 // pred_check_branch
          %1884 = sbr.rel (%p1882) target = $region64
        $region63: #{tpu_custom_call.1} parent=47 // pred_region
          %s1885 = smul.u32 2, %s26
          %s1887 = ssub.s32 512, 512
          %1888 = vsyncadd %s1878, %s1887
          %s1889 = smul.addr %s1885, 2
          %s1890 = smul.addr %s1889, 128
          %s1891 = scalar_lea.hbm %s7, %s1890
          %s1892 = sshll.u32 %s1881, 4
          %s1893 = int_to_ptr.vmem [resolvable:$true] %s1892
          %1898 = dma.vmem_to_hbm [thread:$0]  %s1893, 512, %s1891, %s1878, 256, 256, 16
        $region64: #{tpu_custom_call.1} parent=47 // pred_fallthru
          _
      $region48: #{tpu_custom_call.1} parent=5 // pred_fallthru
        _
      %p1899 = scmp.le.s32.totalorder 2, %s21
      // Predicated region
      $region65: #{tpu_custom_call.1} parent=5 // pred_check
        %p1900 = pneg %p1899
      $region66: #{tpu_custom_call.1} parent=5 // pred_check_branch
        %1902 = sbr.rel (%p1900) target = $region68
      $region67: #{tpu_custom_call.1} parent=5 // pred_region
        %s1903 = ssub.s32 %s21, 2
        // Predicated region
        $region69: #{tpu_custom_call.1} parent=67 // pred_check
          %p1904 = pneg %p207
        $region70: #{tpu_custom_call.1} parent=67 // pred_check_branch
          %1906 = sbr.rel (%p1904) target = $region72
        $region71: #{tpu_custom_call.1} parent=67 // pred_region
          %s1907 = sand.u32 %s192, 1
          %s1908 = scalar_lea.sflag [#allocation4], %s1907
          %s1909 = sand.u32 %s192, 1
          %s1910 = smul.addr %s1909, 32
          %s1911 = scalar_lea.vmem [#allocation9], %s1910
          %1912 = dma.done %s1908, 512
        $region72: #{tpu_custom_call.1} parent=67 // pred_fallthru
          _
      $region68: #{tpu_custom_call.1} parent=5 // pred_fallthru
        _
    $region6: #{tpu_custom_call.1} parent=1 // loop_footer
      %s25 = sadd.s32 1, %s21
    $region7: #{tpu_custom_call.1} parent=1 // loop_footer_branch
      %20 = sbr.rel target = $region3
    $region8: #{tpu_custom_call.1} parent=1 // loop_exit
      _
    %1913 = vsyncpa [#allocation3], 1
    %s1914 = scalar_lea.sflag [#allocation3], 1
    %1915 = vsyncpa %s1914, 1
    %1916 = vsyncpa [#allocation7], 1
    %1917 = vsyncpa [#allocation4], 1
    %s1918 = scalar_lea.sflag [#allocation4], 1
    %1919 = vsyncpa %s1918, 1
    %1920 = vsyncpa [#allocation5], 1
    %s1921 = scalar_lea.sflag [#allocation5], 1
    %1922 = vsyncpa %s1921, 1

</llo_original>
